<compile_context>
chip_gen: v7x
topology: tpu7x:2x2x1
jax: 0.10.0
libtpu: 0.0.40
codegen_flags: <defaults>
</compile_context>

<pallas_src>
import functools
import math

import jax
import jax.numpy as jnp
from jax import lax
from jax.experimental import pallas as pl
from jax.experimental.pallas import tpu as pltpu

BN_EPS = 1e-5
LANES = 128
SUBLANES = 8


def _ceil_to(x, m):
    return ((x + m - 1) // m) * m


# -----------------------------------------------------------------------------
# Fused kernel: one (batch, L-tile) grid step runs the whole network
#   conv1 -> [BN+ReLU -> dilated conv -> BN+ReLU -> 1x1 conv -> +res] * NL
# on a (channels, time) window held entirely in vregs/VMEM.
# -----------------------------------------------------------------------------
def _dilated_resnet_kernel(
        lengths_ref,                       # SMEM (B,) int32   [scalar prefetch]
        x_hbm,                             # HBM  (B, Cin_pad, Lpad) f32 (pl.ANY)
        w0_ref, b0_ref,                    # (F, K*Cin_pad) bf16 / (F, 1) f32
        w1s_ref, b1s_ref, s1s_ref, t1s_ref,  # per-layer bottleneck conv + BN1
        w2s_ref, b2s_ref, s2s_ref, t2s_ref,  # per-layer 1x1 conv + BN2
        o_ref,                             # (1, F, TL) f32
        xwin_ref, dma_sem,                 # scratch: (Cin_pad, W) f32, DMA sem
        *, ksize, layer_dilations, seq_len, tile_l, halo):
    b = pl.program_id(0)
    j = pl.program_id(1)
    wlen = xwin_ref.shape[1]               # tile_l + 2*halo

    # Fetch this tile's input window (tile + conv halo) straight from HBM in
    # native (Cin, L) layout -- no channel/lane-padded copy of x ever hits HBM.
    start = pl.multiple_of(j * tile_l, LANES)
    cp = pltpu.make_async_copy(x_hbm.at[b, :, pl.ds(start, wlen)],
                               xwin_ref, dma_sem)
    cp.start()

    # Masks from the global time index of each lane, computed while the DMA is
    # in flight (scalar SMEM read happens before the wait).
    g = lax.broadcasted_iota(jnp.int32, (1, wlen), 1) + (j * tile_l - halo)
    length = lengths_ref[b]
    frame_mask = (g >= 0) & (g < length)    # PyTorch masked_fill(~mask, 0)
    seq_mask = (g >= 0) & (g < seq_len)     # 'same' zero padding beyond [0, L)

    def conv_same(z, w_mat, bias, dilation):
        # K-tap dilated 'same' conv as ONE im2col matmul on the MXU:
        #   W[Cout, K*Cin] @ patches[K*Cin, wlen]   (bf16 operands, f32 acc).
        # Taps come from XLU lane rolls of the register-resident input; rolled
        # wrap-around is harmless because every conv input is zero outside the
        # real sequence (wrapper padding / seq_mask) and the tile halo covers
        # the stack's receptive field, so wrapped lanes never reach the
        # interior that this tile writes out.
        pad = dilation * (ksize - 1) // 2
        taps = []
        for k in range(ksize):
            off = k * dilation - pad
            taps.append(z if off == 0 else pltpu.roll(z, (-off) % wlen, 1))
        patches = jnp.concatenate(taps, axis=0).astype(jnp.bfloat16)
        y = jnp.dot(w_mat, patches, preferred_element_type=jnp.float32)
        # Bias is NOT folded into the next BN: masking sits between them.
        return jnp.where(frame_mask, y + bias, 0.0)

    def conv_1x1(z, w_mat, bias):
        y = jnp.dot(w_mat, z.astype(jnp.bfloat16),
                    preferred_element_type=jnp.float32)
        return jnp.where(frame_mask, y + bias, 0.0)

    cp.wait()

    # Initial ConvLayer (no pre-activation, no residual).
    act = conv_same(xwin_ref[...], w0_ref[...], b0_ref[...], 1)

    # Residual blocks, statically unrolled (NL is small); bottleneck
    # activations never leave VMEM.  BatchNorm is eval-mode (folded per-channel
    # scale/shift); all elementwise math stays in f32.
    for i, dil in enumerate(layer_dilations):
        residual = act
        z1 = jnp.maximum(act * s1s_ref[i] + t1s_ref[i], 0.0)
        z1 = jnp.where(seq_mask, z1, 0.0)   # emulate 'same' padding at the L edge
        y1 = conv_same(z1, w1s_ref[i], b1s_ref[i], dil)
        z2 = jnp.maximum(y1 * s2s_ref[i] + t2s_ref[i], 0.0)
        y2 = conv_1x1(z2, w2s_ref[i], b2s_ref[i])
        act = y2 + residual

    # Write only the tile interior (drop the recomputed halo).
    o_ref[0] = act[:, halo:halo + tile_l]


# -----------------------------------------------------------------------------
# Parameter preparation (im2col weight layout, BN folding) -- all (C, L) layout
# -----------------------------------------------------------------------------
def _prep_conv(w, b, cin_pad):
    """(Cout, Cin, K) conv weight -> ((Cout, K*cin_pad) bf16, (Cout, 1) f32)."""
    cout, cin, k = w.shape
    wt = jnp.transpose(w, (0, 2, 1))                           # (Cout, K, Cin)
    wt = jnp.pad(wt, ((0, 0), (0, 0), (0, cin_pad - cin)))
    w_mat = wt.reshape(cout, k * cin_pad).astype(jnp.bfloat16)
    b_col = b.reshape(cout, 1).astype(jnp.float32)
    return w_mat, b_col


def _prep_bn(gamma, beta, mean, var):
    """Fold eval-mode BatchNorm into per-channel (C, 1) scale/shift."""
    scale = gamma / jnp.sqrt(var + BN_EPS)
    shift = beta - mean * scale
    c = gamma.shape[0]
    return (scale.reshape(c, 1).astype(jnp.float32),
            shift.reshape(c, 1).astype(jnp.float32))


# -----------------------------------------------------------------------------
# Forward pass wrapper
# -----------------------------------------------------------------------------
def dilated_resnet_forward(x_ncl, lengths, params, dilations, *, tile_l=512,
                           vmem_limit_mb=48):
    """x_ncl: (B, Cin, L), lengths: (B,) int -> (B, num_filters, L) f32.

    Frames t >= lengths[b] are treated as masked (masked_fill semantics).
    tile_l: L-tile size (multiple of 128).  For long sequences pick ~2-4K on
    v7x (64 MiB VMEM) and up to 2x that on v5e/v6e (128 MiB VMEM); each tile
    recomputes a receptive-field halo so tiles stay independent.
    """
    w0, b0 = params["conv1"]
    num_filters, input_dim, ksize = w0.shape
    n_bottleneck = params["layers"][0]["conv1"][0].shape[0]
    nl = len(params["layers"])
    B, _, L = x_ncl.shape

    pads = [(ksize - 1) // 2] + [int(d) * (ksize - 1) // 2 for d in dilations]
    max_pad = max(pads)
    rf_total = sum(pads)                   # receptive-field halo of the stack

    tile_l = _ceil_to(max(tile_l, LANES), LANES)
    nt = -(-L // tile_l)
    if nt == 1:
        halo = 0
        tl = _ceil_to(L + max_pad, LANES)  # slack so rolled taps never wrap
    else:
        tl = tile_l
        halo = _ceil_to(rf_total, LANES)   # 128-aligned so slices stay lane-clean
    lt = nt * tl
    wlen = tl + 2 * halo
    lpad = lt + 2 * halo

    # Native-layout input, zero 'same' padding outside [0, L); tiny sublane pad
    # of the 4 real input channels to 8 (the only channel padding anywhere).
    cin_pad = _ceil_to(input_dim, SUBLANES)
    xp = jnp.pad(x_ncl.astype(jnp.float32),
                 ((0, 0), (0, cin_pad - input_dim), (halo, lpad - halo - L)))
    lengths = jnp.asarray(lengths, jnp.int32)

    w0m, b0c = _prep_conv(w0, b0, cin_pad)
    w1s, b1s, s1s, t1s, w2s, b2s, s2s, t2s = ([] for _ in range(8))
    for layer in params["layers"]:
        s, t = _prep_bn(*layer["b1"]); s1s.append(s); t1s.append(t)
        wm, bc = _prep_conv(*layer["conv1"], num_filters)
        w1s.append(wm); b1s.append(bc)
        s, t = _prep_bn(*layer["b2"]); s2s.append(s); t2s.append(t)
        wm, bc = _prep_conv(*layer["conv2"], n_bottleneck)
        w2s.append(wm); b2s.append(bc)
    w1s, b1s, s1s, t1s = map(jnp.stack, (w1s, b1s, s1s, t1s))
    w2s, b2s, s2s, t2s = map(jnp.stack, (w2s, b2s, s2s, t2s))

    kernel = functools.partial(
        _dilated_resnet_kernel, ksize=ksize,
        layer_dilations=tuple(int(d) for d in dilations),
        seq_len=L, tile_l=tl, halo=halo)

    const2 = lambda b, j, lens: (0, 0)
    const3 = lambda b, j, lens: (0, 0, 0)

    out = pl.pallas_call(
        kernel,
        out_shape=jax.ShapeDtypeStruct((B, num_filters, lt), jnp.float32),
        grid_spec=pltpu.PrefetchScalarGridSpec(
            num_scalar_prefetch=1,             # lengths -> SMEM
            grid=(B, nt),
            in_specs=[
                pl.BlockSpec(memory_space=pl.ANY),                     # x (HBM)
                pl.BlockSpec((num_filters, ksize * cin_pad), const2),  # w0
                pl.BlockSpec((num_filters, 1), const2),                # b0
                pl.BlockSpec((nl, n_bottleneck, ksize * num_filters), const3),
                pl.BlockSpec((nl, n_bottleneck, 1), const3),           # b1
                pl.BlockSpec((nl, num_filters, 1), const3),            # bn1 scale
                pl.BlockSpec((nl, num_filters, 1), const3),            # bn1 shift
                pl.BlockSpec((nl, num_filters, n_bottleneck), const3), # w2
                pl.BlockSpec((nl, num_filters, 1), const3),            # b2
                pl.BlockSpec((nl, n_bottleneck, 1), const3),           # bn2 scale
                pl.BlockSpec((nl, n_bottleneck, 1), const3),           # bn2 shift
            ],
            out_specs=pl.BlockSpec((1, num_filters, tl),
                                   lambda b, j, lens: (b, 0, j)),
            scratch_shapes=[pltpu.VMEM((cin_pad, wlen), jnp.float32),
                            pltpu.SemaphoreType.DMA],
        ),
        compiler_params=pltpu.CompilerParams(
            # Both axes independent (halo recompute) -> shards across both
            # v7x TensorCores; blocks here are tiny, 48 MiB is safe on all gens
            # (raise toward ~96 MiB on v5e/v6e for very large L tiles).
            dimension_semantics=("parallel", "parallel"),
            vmem_limit_bytes=vmem_limit_mb * 1024 * 1024),
    )(lengths, xp, w0m, b0c, w1s, b1s, s1s, t1s, w2s, b2s, s2s, t2s)

    return out[:, :, :L]


# -----------------------------------------------------------------------------
# Parameter init (deterministic, mirrors the PyTorch module's shapes)
# -----------------------------------------------------------------------------
def _conv_init(key, cin, cout, k):
    k1, k2 = jax.random.split(key)
    bound = 1.0 / math.sqrt(cin * k)
    w = jax.random.uniform(k1, (cout, cin, k), jnp.float32, -bound, bound)
    b = jax.random.uniform(k2, (cout,), jnp.float32, -bound, bound)
    return w, b


def _bn_init(key, c):
    k1, k2, k3, k4 = jax.random.split(key, 4)
    gamma = 1.0 + 0.1 * jax.random.normal(k1, (c,), jnp.float32)
    beta = 0.1 * jax.random.normal(k2, (c,), jnp.float32)
    mean = 0.1 * jax.random.normal(k3, (c,), jnp.float32)
    var = 1.0 + 0.5 * jax.random.uniform(k4, (c,), jnp.float32)
    return gamma, beta, mean, var


def init_dilated_resnet(key, input_dim, num_filters, kernel_size,
                        bottleneck_factor, dilation_rate, num_layers,
                        first_dilated_layer):
    n_bottleneck = math.floor(num_filters * bottleneck_factor)
    keys = jax.random.split(key, 1 + 4 * num_layers)
    params = {"conv1": _conv_init(keys[0], input_dim, num_filters, kernel_size),
              "layers": []}
    dilations = []
    for i in range(num_layers):
        shifted = i - first_dilated_layer + 1
        dilations.append(int(max(1, dilation_rate ** shifted)))
        base = 1 + 4 * i
        params["layers"].append({
            "b1": _bn_init(keys[base + 0], num_filters),
            "conv1": _conv_init(keys[base + 1], num_filters, n_bottleneck,
                                kernel_size),
            "b2": _bn_init(keys[base + 2], n_bottleneck),
            "conv2": _conv_init(keys[base + 3], n_bottleneck, num_filters, 1),
        })
    return params, dilations


# -----------------------------------------------------------------------------
# Pure-JAX reference (mirrors the PyTorch module, eval-mode BN, all f32)
# -----------------------------------------------------------------------------
def ref_forward(x_ncl, lengths, params, dilations):
    B, _, L = x_ncl.shape
    mask = (jnp.arange(L)[None, :] < lengths[:, None])[:, None, :]   # (B,1,L)

    def convlayer(x, w, b, dil):
        pad = dil * (w.shape[2] - 1) // 2
        y = lax.conv_general_dilated(
            x, w, window_strides=(1,), padding=[(pad, pad)],
            rhs_dilation=(dil,), dimension_numbers=("NCH", "OIH", "NCH"))
        y = y + b[None, :, None]
        return jnp.where(mask, y, 0.0)

    def bn(x, gamma, beta, mean, var):
        return ((x - mean[None, :, None])
                / jnp.sqrt(var[None, :, None] + BN_EPS)
                * gamma[None, :, None] + beta[None, :, None])

    x = convlayer(x_ncl.astype(jnp.float32), *params["conv1"], 1)
    for layer, dil in zip(params["layers"], dilations):
        inp = x
        x = jnp.maximum(bn(x, *layer["b1"]), 0.0)
        x = convlayer(x, *layer["conv1"], dil)
        x = jnp.maximum(bn(x, *layer["b2"]), 0.0)
        x = convlayer(x, *layer["conv2"], 1)
        x = x + inp
    return x


# -----------------------------------------------------------------------------
if __name__ == "__main__":
    # DilatedResNet(input_dim=4, num_filters=32, kernel_size=3,
    #               bottleneck_factor=0.5, dilation_rate=2, num_layers=3,
    #               first_dilated_layer=2)
    input_dim, num_filters, kernel_size = 4, 32, 3
    bottleneck_factor, dilation_rate = 0.5, 2
    num_layers, first_dilated_layer = 3, 2

    key = jax.random.PRNGKey(0)
    kp, kx1, kx2 = jax.random.split(key, 3)
    params, dilations = init_dilated_resnet(
        kp, input_dim, num_filters, kernel_size, bottleneck_factor,
        dilation_rate, num_layers, first_dilated_layer)

    # Tolerance: MXU matmuls use bf16 operands (f32 accumulation); all
    # elementwise math is f32.
    TOL = 3e-2

    # Case 1: small sequence -> single L-tile per batch element.
    B, L = 2, 16
    x = jax.random.normal(kx1, (B, input_dim, L), jnp.float32)   # NCL like PyTorch
    lengths = jnp.array([L, 12], jnp.int32)
    out = jax.block_until_ready(
        dilated_resnet_forward(x, lengths, params, dilations))
    ref = ref_forward(x, lengths, params, dilations)
    assert out.shape == (B, num_filters, L)
    assert jnp.allclose(out, ref, atol=TOL, rtol=TOL), (
        "single-tile mismatch, max abs diff "
        f"{float(jnp.max(jnp.abs(out - ref)))}")

    # Case 2: longer sequence -> exercises the multi-L-tile halo path
    # (grid=(2,2), both grid axes parallel).
    B2, L2 = 2, 200
    x2 = jax.random.normal(kx2, (B2, input_dim, L2), jnp.float32)
    lengths2 = jnp.array([200, 137], jnp.int32)
    out2 = jax.block_until_ready(
        dilated_resnet_forward(x2, lengths2, params, dilations, tile_l=128))
    ref2 = ref_forward(x2, lengths2, params, dilations)
    assert out2.shape == (B2, num_filters, L2)
    assert jnp.allclose(out2, ref2, atol=TOL, rtol=TOL), (
        "multi-tile mismatch, max abs diff "
        f"{float(jnp.max(jnp.abs(out2 - ref2)))}")

    print("KERNEL_OK")
</pallas_src>

<mosaic_0001>
module attributes {stable_mosaic.version = 11 : i64} {
  func.func @_dilated_resnet_kernel(%arg0: i32, %arg1: i32, %arg2: memref<2xi32, #tpu.memory_space<smem>>, %arg3: memref<2x8x128xf32, #tpu.memory_space<any>>, %arg4: memref<32x24xbf16, #tpu.memory_space<vmem>>, %arg5: memref<32x1xf32, #tpu.memory_space<vmem>>, %arg6: memref<3x16x96xbf16, #tpu.memory_space<vmem>>, %arg7: memref<3x16x1xf32, #tpu.memory_space<vmem>>, %arg8: memref<3x32x1xf32, #tpu.memory_space<vmem>>, %arg9: memref<3x32x1xf32, #tpu.memory_space<vmem>>, %arg10: memref<3x32x16xbf16, #tpu.memory_space<vmem>>, %arg11: memref<3x32x1xf32, #tpu.memory_space<vmem>>, %arg12: memref<3x16x1xf32, #tpu.memory_space<vmem>>, %arg13: memref<3x16x1xf32, #tpu.memory_space<vmem>>, %arg14: memref<1x32x128xf32, #tpu.memory_space<vmem>>, %arg15: memref<8x128xf32, #tpu.memory_space<vmem>>, %arg16: memref<!tpu.dma_semaphore, #tpu.memory_space<semaphore_mem>>) attributes {dimension_semantics = [#tpu.dimension_semantics<parallel>, #tpu.dimension_semantics<parallel>], iteration_bounds = array<i64: 2, 1>, scalar_prefetch = 1 : i64, scratch_operands = 2 : i64, tpu.core_type = #tpu.core_type<tc>, window_params = [{}, {pipeline_mode = #tpu.pipeline_mode<synchronous>, transform_indices = @transform_1, window_bounds = array<i64: 32, 24>}, {pipeline_mode = #tpu.pipeline_mode<synchronous>, transform_indices = @transform_2, window_bounds = array<i64: 32, 1>}, {pipeline_mode = #tpu.pipeline_mode<synchronous>, transform_indices = @transform_3, window_bounds = array<i64: 3, 16, 96>}, {pipeline_mode = #tpu.pipeline_mode<synchronous>, transform_indices = @transform_4, window_bounds = array<i64: 3, 16, 1>}, {pipeline_mode = #tpu.pipeline_mode<synchronous>, transform_indices = @transform_5, window_bounds = array<i64: 3, 32, 1>}, {pipeline_mode = #tpu.pipeline_mode<synchronous>, transform_indices = @transform_6, window_bounds = array<i64: 3, 32, 1>}, {pipeline_mode = #tpu.pipeline_mode<synchronous>, transform_indices = @transform_7, window_bounds = array<i64: 3, 32, 16>}, {pipeline_mode = #tpu.pipeline_mode<synchronous>, transform_indices = @transform_8, window_bounds = array<i64: 3, 32, 1>}, {pipeline_mode = #tpu.pipeline_mode<synchronous>, transform_indices = @transform_9, window_bounds = array<i64: 3, 16, 1>}, {pipeline_mode = #tpu.pipeline_mode<synchronous>, transform_indices = @transform_10, window_bounds = array<i64: 3, 16, 1>}, {transform_indices = @transform_11, window_bounds = array<i64: 1, 32, 128>}]} {
    %c128_i32 = arith.constant 128 : i32
    %0 = arith.muli %arg1, %c128_i32 : i32
    %1 = tpu.assume_multiple %0, 128 : i32
    %c0_i32 = arith.constant 0 : i32
    %2 = tpu.memref_slice %arg3[%arg0, %c0_i32, %1] : memref<2x8x128xf32, #tpu.memory_space<any>> -> memref<1x8x128xf32, #tpu.memory_space<any>>
    %3 = tpu.memref_squeeze %2 : memref<1x8x128xf32, #tpu.memory_space<any>> -> memref<8x128xf32, #tpu.memory_space<any>>
    tpu.enqueue_dma source(%3 : memref<8x128xf32, #tpu.memory_space<any>>) target(%arg15 : memref<8x128xf32, #tpu.memory_space<vmem>>) target_semaphore(%arg16 : memref<!tpu.dma_semaphore, #tpu.memory_space<semaphore_mem>>)
    %4 = tpu.iota {dimensions = array<i32: 1>} : vector<1x128xi32>
    %c128_i32_0 = arith.constant 128 : i32
    %5 = arith.muli %arg1, %c128_i32_0 : i32
    %c0_i32_1 = arith.constant 0 : i32
    %6 = arith.subi %5, %c0_i32_1 : i32
    %7 = vector.broadcast %6 : i32 to vector<1x128xi32>
    %8 = arith.addi %4, %7 : vector<1x128xi32>
    %9 = arith.index_cast %arg0 : i32 to index
    %10 = memref.load %arg2[%9] : memref<2xi32, #tpu.memory_space<smem>>
    %c0_i32_2 = arith.constant 0 : i32
    %11 = vector.broadcast %c0_i32_2 : i32 to vector<1x128xi32>
    %12 = arith.cmpi sge, %8, %11 : vector<1x128xi32>
    %13 = vector.broadcast %10 : i32 to vector<1x128xi32>
    %14 = arith.cmpi slt, %8, %13 : vector<1x128xi32>
    %15 = arith.andi %12, %14 : vector<1x128xi1>
    %c0_i32_3 = arith.constant 0 : i32
    %16 = vector.broadcast %c0_i32_3 : i32 to vector<1x128xi32>
    %17 = arith.cmpi sge, %8, %16 : vector<1x128xi32>
    %c16_i32 = arith.constant 16 : i32
    %18 = vector.broadcast %c16_i32 : i32 to vector<1x128xi32>
    %19 = arith.cmpi slt, %8, %18 : vector<1x128xi32>
    %20 = arith.andi %17, %19 : vector<1x128xi1>
    %c0_i32_4 = arith.constant 0 : i32
    %21 = tpu.memref_slice %arg3[%arg0, %c0_i32_4, %1] : memref<2x8x128xf32, #tpu.memory_space<any>> -> memref<1x8x128xf32, #tpu.memory_space<any>>
    %22 = tpu.memref_squeeze %21 : memref<1x8x128xf32, #tpu.memory_space<any>> -> memref<8x128xf32, #tpu.memory_space<any>>
    tpu.wait_dma2 semaphore(%arg16 : memref<!tpu.dma_semaphore, #tpu.memory_space<semaphore_mem>>) src(%22 : memref<8x128xf32, #tpu.memory_space<any>>) dst(%arg15 : memref<8x128xf32, #tpu.memory_space<vmem>>)
    %c0 = arith.constant 0 : index
    %c0_5 = arith.constant 0 : index
    %23 = vector.load %arg15[%c0, %c0_5] : memref<8x128xf32, #tpu.memory_space<vmem>>, vector<8x128xf32>
    %c0_6 = arith.constant 0 : index
    %c0_7 = arith.constant 0 : index
    %24 = vector.load %arg4[%c0_6, %c0_7] : memref<32x24xbf16, #tpu.memory_space<vmem>>, vector<32x24xbf16>
    %c0_8 = arith.constant 0 : index
    %c0_9 = arith.constant 0 : index
    %25 = vector.load %arg5[%c0_8, %c0_9] : memref<32x1xf32, #tpu.memory_space<vmem>>, vector<32x1xf32>
    %c1_i32 = arith.constant 1 : i32
    %26 = tpu.dynamic_rotate %23 by %c1_i32 dim 1 : vector<8x128xf32>, i32 -> vector<8x128xf32>
    %c127_i32 = arith.constant 127 : i32
    %27 = tpu.dynamic_rotate %23 by %c127_i32 dim 1 : vector<8x128xf32>, i32 -> vector<8x128xf32>
    %28 = tpu.concatenate %26, %23, %27 in 0 : vector<8x128xf32>, vector<8x128xf32>, vector<8x128xf32> -> vector<24x128xf32>
    %29 = arith.truncf %28 : vector<24x128xf32> to vector<24x128xbf16>
    %cst = arith.constant dense<0.000000e+00> : vector<32x128xf32>
    %30 = tpu.matmul %24, %29, %cst {dimension_numbers = #tpu.dot_dimension_numbers<[1], [0], [0], [1], [0, 0, 1, 1], [], []>} : vector<32x24xbf16>, vector<24x128xbf16>, vector<32x128xf32> -> vector<32x128xf32>
    %31 = vector.broadcast %25 : vector<32x1xf32> to vector<32x128xf32>
    %32 = arith.addf %30, %31 : vector<32x128xf32>
    %cst_10 = arith.constant 0.000000e+00 : f32
    %33 = vector.shape_cast %15 : vector<1x128xi1> to vector<1x128xi1>
    %34 = vector.broadcast %33 : vector<1x128xi1> to vector<32x128xi1>
    %35 = vector.broadcast %cst_10 : f32 to vector<32x128xf32>
    %36 = arith.select %34, %32, %35 : vector<32x128xi1>, vector<32x128xf32>
    %c0_11 = arith.constant 0 : index
    %c0_12 = arith.constant 0 : index
    %c0_13 = arith.constant 0 : index
    %37 = vector.load %arg8[%c0_11, %c0_12, %c0_13] : memref<3x32x1xf32, #tpu.memory_space<vmem>>, vector<1x32x1xf32>
    %38 = vector.shape_cast %37 : vector<1x32x1xf32> to vector<32x1xf32>
    %39 = vector.broadcast %38 : vector<32x1xf32> to vector<32x128xf32>
    %40 = arith.mulf %36, %39 : vector<32x128xf32>
    %c0_14 = arith.constant 0 : index
    %c0_15 = arith.constant 0 : index
    %c0_16 = arith.constant 0 : index
    %41 = vector.load %arg9[%c0_14, %c0_15, %c0_16] : memref<3x32x1xf32, #tpu.memory_space<vmem>>, vector<1x32x1xf32>
    %42 = vector.shape_cast %41 : vector<1x32x1xf32> to vector<32x1xf32>
    %43 = vector.broadcast %42 : vector<32x1xf32> to vector<32x128xf32>
    %44 = arith.addf %40, %43 : vector<32x128xf32>
    %cst_17 = arith.constant 0.000000e+00 : f32
    %45 = vector.broadcast %cst_17 : f32 to vector<32x128xf32>
    %46 = arith.maximumf %44, %45 : vector<32x128xf32>
    %cst_18 = arith.constant 0.000000e+00 : f32
    %47 = vector.shape_cast %20 : vector<1x128xi1> to vector<1x128xi1>
    %48 = vector.broadcast %47 : vector<1x128xi1> to vector<32x128xi1>
    %49 = vector.broadcast %cst_18 : f32 to vector<32x128xf32>
    %50 = arith.select %48, %46, %49 : vector<32x128xi1>, vector<32x128xf32>
    %c0_19 = arith.constant 0 : index
    %c0_20 = arith.constant 0 : index
    %c0_21 = arith.constant 0 : index
    %51 = vector.load %arg6[%c0_19, %c0_20, %c0_21] : memref<3x16x96xbf16, #tpu.memory_space<vmem>>, vector<1x16x96xbf16>
    %52 = vector.shape_cast %51 : vector<1x16x96xbf16> to vector<16x96xbf16>
    %c0_22 = arith.constant 0 : index
    %c0_23 = arith.constant 0 : index
    %c0_24 = arith.constant 0 : index
    %53 = vector.load %arg7[%c0_22, %c0_23, %c0_24] : memref<3x16x1xf32, #tpu.memory_space<vmem>>, vector<1x16x1xf32>
    %54 = vector.shape_cast %53 : vector<1x16x1xf32> to vector<16x1xf32>
    %c1_i32_25 = arith.constant 1 : i32
    %55 = tpu.dynamic_rotate %50 by %c1_i32_25 dim 1 : vector<32x128xf32>, i32 -> vector<32x128xf32>
    %c127_i32_26 = arith.constant 127 : i32
    %56 = tpu.dynamic_rotate %50 by %c127_i32_26 dim 1 : vector<32x128xf32>, i32 -> vector<32x128xf32>
    %57 = tpu.concatenate %55, %50, %56 in 0 : vector<32x128xf32>, vector<32x128xf32>, vector<32x128xf32> -> vector<96x128xf32>
    %58 = arith.truncf %57 : vector<96x128xf32> to vector<96x128xbf16>
    %cst_27 = arith.constant dense<0.000000e+00> : vector<16x128xf32>
    %59 = tpu.matmul %52, %58, %cst_27 {dimension_numbers = #tpu.dot_dimension_numbers<[1], [0], [0], [1], [0, 0, 1, 1], [], []>} : vector<16x96xbf16>, vector<96x128xbf16>, vector<16x128xf32> -> vector<16x128xf32>
    %60 = vector.broadcast %54 : vector<16x1xf32> to vector<16x128xf32>
    %61 = arith.addf %59, %60 : vector<16x128xf32>
    %cst_28 = arith.constant 0.000000e+00 : f32
    %62 = vector.shape_cast %15 : vector<1x128xi1> to vector<1x128xi1>
    %63 = vector.broadcast %62 : vector<1x128xi1> to vector<16x128xi1>
    %64 = vector.broadcast %cst_28 : f32 to vector<16x128xf32>
    %65 = arith.select %63, %61, %64 : vector<16x128xi1>, vector<16x128xf32>
    %c0_29 = arith.constant 0 : index
    %c0_30 = arith.constant 0 : index
    %c0_31 = arith.constant 0 : index
    %66 = vector.load %arg12[%c0_29, %c0_30, %c0_31] : memref<3x16x1xf32, #tpu.memory_space<vmem>>, vector<1x16x1xf32>
    %67 = vector.shape_cast %66 : vector<1x16x1xf32> to vector<16x1xf32>
    %68 = vector.broadcast %67 : vector<16x1xf32> to vector<16x128xf32>
    %69 = arith.mulf %65, %68 : vector<16x128xf32>
    %c0_32 = arith.constant 0 : index
    %c0_33 = arith.constant 0 : index
    %c0_34 = arith.constant 0 : index
    %70 = vector.load %arg13[%c0_32, %c0_33, %c0_34] : memref<3x16x1xf32, #tpu.memory_space<vmem>>, vector<1x16x1xf32>
    %71 = vector.shape_cast %70 : vector<1x16x1xf32> to vector<16x1xf32>
    %72 = vector.broadcast %71 : vector<16x1xf32> to vector<16x128xf32>
    %73 = arith.addf %69, %72 : vector<16x128xf32>
    %cst_35 = arith.constant 0.000000e+00 : f32
    %74 = vector.broadcast %cst_35 : f32 to vector<16x128xf32>
    %75 = arith.maximumf %73, %74 : vector<16x128xf32>
    %c0_36 = arith.constant 0 : index
    %c0_37 = arith.constant 0 : index
    %c0_38 = arith.constant 0 : index
    %76 = vector.load %arg10[%c0_36, %c0_37, %c0_38] : memref<3x32x16xbf16, #tpu.memory_space<vmem>>, vector<1x32x16xbf16>
    %77 = vector.shape_cast %76 : vector<1x32x16xbf16> to vector<32x16xbf16>
    %c0_39 = arith.constant 0 : index
    %c0_40 = arith.constant 0 : index
    %c0_41 = arith.constant 0 : index
    %78 = vector.load %arg11[%c0_39, %c0_40, %c0_41] : memref<3x32x1xf32, #tpu.memory_space<vmem>>, vector<1x32x1xf32>
    %79 = vector.shape_cast %78 : vector<1x32x1xf32> to vector<32x1xf32>
    %80 = arith.truncf %75 : vector<16x128xf32> to vector<16x128xbf16>
    %cst_42 = arith.constant dense<0.000000e+00> : vector<32x128xf32>
    %81 = tpu.matmul %77, %80, %cst_42 {dimension_numbers = #tpu.dot_dimension_numbers<[1], [0], [0], [1], [0, 0, 1, 1], [], []>} : vector<32x16xbf16>, vector<16x128xbf16>, vector<32x128xf32> -> vector<32x128xf32>
    %82 = vector.broadcast %79 : vector<32x1xf32> to vector<32x128xf32>
    %83 = arith.addf %81, %82 : vector<32x128xf32>
    %cst_43 = arith.constant 0.000000e+00 : f32
    %84 = vector.shape_cast %15 : vector<1x128xi1> to vector<1x128xi1>
    %85 = vector.broadcast %84 : vector<1x128xi1> to vector<32x128xi1>
    %86 = vector.broadcast %cst_43 : f32 to vector<32x128xf32>
    %87 = arith.select %85, %83, %86 : vector<32x128xi1>, vector<32x128xf32>
    %88 = arith.addf %87, %36 : vector<32x128xf32>
    %c1 = arith.constant 1 : index
    %c0_44 = arith.constant 0 : index
    %c0_45 = arith.constant 0 : index
    %89 = vector.load %arg8[%c1, %c0_44, %c0_45] : memref<3x32x1xf32, #tpu.memory_space<vmem>>, vector<1x32x1xf32>
    %90 = vector.shape_cast %89 : vector<1x32x1xf32> to vector<32x1xf32>
    %91 = vector.broadcast %90 : vector<32x1xf32> to vector<32x128xf32>
    %92 = arith.mulf %88, %91 : vector<32x128xf32>
    %c1_46 = arith.constant 1 : index
    %c0_47 = arith.constant 0 : index
    %c0_48 = arith.constant 0 : index
    %93 = vector.load %arg9[%c1_46, %c0_47, %c0_48] : memref<3x32x1xf32, #tpu.memory_space<vmem>>, vector<1x32x1xf32>
    %94 = vector.shape_cast %93 : vector<1x32x1xf32> to vector<32x1xf32>
    %95 = vector.broadcast %94 : vector<32x1xf32> to vector<32x128xf32>
    %96 = arith.addf %92, %95 : vector<32x128xf32>
    %cst_49 = arith.constant 0.000000e+00 : f32
    %97 = vector.broadcast %cst_49 : f32 to vector<32x128xf32>
    %98 = arith.maximumf %96, %97 : vector<32x128xf32>
    %cst_50 = arith.constant 0.000000e+00 : f32
    %99 = vector.shape_cast %20 : vector<1x128xi1> to vector<1x128xi1>
    %100 = vector.broadcast %99 : vector<1x128xi1> to vector<32x128xi1>
    %101 = vector.broadcast %cst_50 : f32 to vector<32x128xf32>
    %102 = arith.select %100, %98, %101 : vector<32x128xi1>, vector<32x128xf32>
    %c1_51 = arith.constant 1 : index
    %c0_52 = arith.constant 0 : index
    %c0_53 = arith.constant 0 : index
    %103 = vector.load %arg6[%c1_51, %c0_52, %c0_53] : memref<3x16x96xbf16, #tpu.memory_space<vmem>>, vector<1x16x96xbf16>
    %104 = vector.shape_cast %103 : vector<1x16x96xbf16> to vector<16x96xbf16>
    %c1_54 = arith.constant 1 : index
    %c0_55 = arith.constant 0 : index
    %c0_56 = arith.constant 0 : index
    %105 = vector.load %arg7[%c1_54, %c0_55, %c0_56] : memref<3x16x1xf32, #tpu.memory_space<vmem>>, vector<1x16x1xf32>
    %106 = vector.shape_cast %105 : vector<1x16x1xf32> to vector<16x1xf32>
    %c1_i32_57 = arith.constant 1 : i32
    %107 = tpu.dynamic_rotate %102 by %c1_i32_57 dim 1 : vector<32x128xf32>, i32 -> vector<32x128xf32>
    %c127_i32_58 = arith.constant 127 : i32
    %108 = tpu.dynamic_rotate %102 by %c127_i32_58 dim 1 : vector<32x128xf32>, i32 -> vector<32x128xf32>
    %109 = tpu.concatenate %107, %102, %108 in 0 : vector<32x128xf32>, vector<32x128xf32>, vector<32x128xf32> -> vector<96x128xf32>
    %110 = arith.truncf %109 : vector<96x128xf32> to vector<96x128xbf16>
    %cst_59 = arith.constant dense<0.000000e+00> : vector<16x128xf32>
    %111 = tpu.matmul %104, %110, %cst_59 {dimension_numbers = #tpu.dot_dimension_numbers<[1], [0], [0], [1], [0, 0, 1, 1], [], []>} : vector<16x96xbf16>, vector<96x128xbf16>, vector<16x128xf32> -> vector<16x128xf32>
    %112 = vector.broadcast %106 : vector<16x1xf32> to vector<16x128xf32>
    %113 = arith.addf %111, %112 : vector<16x128xf32>
    %cst_60 = arith.constant 0.000000e+00 : f32
    %114 = vector.shape_cast %15 : vector<1x128xi1> to vector<1x128xi1>
    %115 = vector.broadcast %114 : vector<1x128xi1> to vector<16x128xi1>
    %116 = vector.broadcast %cst_60 : f32 to vector<16x128xf32>
    %117 = arith.select %115, %113, %116 : vector<16x128xi1>, vector<16x128xf32>
    %c1_61 = arith.constant 1 : index
    %c0_62 = arith.constant 0 : index
    %c0_63 = arith.constant 0 : index
    %118 = vector.load %arg12[%c1_61, %c0_62, %c0_63] : memref<3x16x1xf32, #tpu.memory_space<vmem>>, vector<1x16x1xf32>
    %119 = vector.shape_cast %118 : vector<1x16x1xf32> to vector<16x1xf32>
    %120 = vector.broadcast %119 : vector<16x1xf32> to vector<16x128xf32>
    %121 = arith.mulf %117, %120 : vector<16x128xf32>
    %c1_64 = arith.constant 1 : index
    %c0_65 = arith.constant 0 : index
    %c0_66 = arith.constant 0 : index
    %122 = vector.load %arg13[%c1_64, %c0_65, %c0_66] : memref<3x16x1xf32, #tpu.memory_space<vmem>>, vector<1x16x1xf32>
    %123 = vector.shape_cast %122 : vector<1x16x1xf32> to vector<16x1xf32>
    %124 = vector.broadcast %123 : vector<16x1xf32> to vector<16x128xf32>
    %125 = arith.addf %121, %124 : vector<16x128xf32>
    %cst_67 = arith.constant 0.000000e+00 : f32
    %126 = vector.broadcast %cst_67 : f32 to vector<16x128xf32>
    %127 = arith.maximumf %125, %126 : vector<16x128xf32>
    %c1_68 = arith.constant 1 : index
    %c0_69 = arith.constant 0 : index
    %c0_70 = arith.constant 0 : index
    %128 = vector.load %arg10[%c1_68, %c0_69, %c0_70] : memref<3x32x16xbf16, #tpu.memory_space<vmem>>, vector<1x32x16xbf16>
    %129 = vector.shape_cast %128 : vector<1x32x16xbf16> to vector<32x16xbf16>
    %c1_71 = arith.constant 1 : index
    %c0_72 = arith.constant 0 : index
    %c0_73 = arith.constant 0 : index
    %130 = vector.load %arg11[%c1_71, %c0_72, %c0_73] : memref<3x32x1xf32, #tpu.memory_space<vmem>>, vector<1x32x1xf32>
    %131 = vector.shape_cast %130 : vector<1x32x1xf32> to vector<32x1xf32>
    %132 = arith.truncf %127 : vector<16x128xf32> to vector<16x128xbf16>
    %cst_74 = arith.constant dense<0.000000e+00> : vector<32x128xf32>
    %133 = tpu.matmul %129, %132, %cst_74 {dimension_numbers = #tpu.dot_dimension_numbers<[1], [0], [0], [1], [0, 0, 1, 1], [], []>} : vector<32x16xbf16>, vector<16x128xbf16>, vector<32x128xf32> -> vector<32x128xf32>
    %134 = vector.broadcast %131 : vector<32x1xf32> to vector<32x128xf32>
    %135 = arith.addf %133, %134 : vector<32x128xf32>
    %cst_75 = arith.constant 0.000000e+00 : f32
    %136 = vector.shape_cast %15 : vector<1x128xi1> to vector<1x128xi1>
    %137 = vector.broadcast %136 : vector<1x128xi1> to vector<32x128xi1>
    %138 = vector.broadcast %cst_75 : f32 to vector<32x128xf32>
    %139 = arith.select %137, %135, %138 : vector<32x128xi1>, vector<32x128xf32>
    %140 = arith.addf %139, %88 : vector<32x128xf32>
    %c2 = arith.constant 2 : index
    %c0_76 = arith.constant 0 : index
    %c0_77 = arith.constant 0 : index
    %141 = vector.load %arg8[%c2, %c0_76, %c0_77] : memref<3x32x1xf32, #tpu.memory_space<vmem>>, vector<1x32x1xf32>
    %142 = vector.shape_cast %141 : vector<1x32x1xf32> to vector<32x1xf32>
    %143 = vector.broadcast %142 : vector<32x1xf32> to vector<32x128xf32>
    %144 = arith.mulf %140, %143 : vector<32x128xf32>
    %c2_78 = arith.constant 2 : index
    %c0_79 = arith.constant 0 : index
    %c0_80 = arith.constant 0 : index
    %145 = vector.load %arg9[%c2_78, %c0_79, %c0_80] : memref<3x32x1xf32, #tpu.memory_space<vmem>>, vector<1x32x1xf32>
    %146 = vector.shape_cast %145 : vector<1x32x1xf32> to vector<32x1xf32>
    %147 = vector.broadcast %146 : vector<32x1xf32> to vector<32x128xf32>
    %148 = arith.addf %144, %147 : vector<32x128xf32>
    %cst_81 = arith.constant 0.000000e+00 : f32
    %149 = vector.broadcast %cst_81 : f32 to vector<32x128xf32>
    %150 = arith.maximumf %148, %149 : vector<32x128xf32>
    %cst_82 = arith.constant 0.000000e+00 : f32
    %151 = vector.shape_cast %20 : vector<1x128xi1> to vector<1x128xi1>
    %152 = vector.broadcast %151 : vector<1x128xi1> to vector<32x128xi1>
    %153 = vector.broadcast %cst_82 : f32 to vector<32x128xf32>
    %154 = arith.select %152, %150, %153 : vector<32x128xi1>, vector<32x128xf32>
    %c2_83 = arith.constant 2 : index
    %c0_84 = arith.constant 0 : index
    %c0_85 = arith.constant 0 : index
    %155 = vector.load %arg6[%c2_83, %c0_84, %c0_85] : memref<3x16x96xbf16, #tpu.memory_space<vmem>>, vector<1x16x96xbf16>
    %156 = vector.shape_cast %155 : vector<1x16x96xbf16> to vector<16x96xbf16>
    %c2_86 = arith.constant 2 : index
    %c0_87 = arith.constant 0 : index
    %c0_88 = arith.constant 0 : index
    %157 = vector.load %arg7[%c2_86, %c0_87, %c0_88] : memref<3x16x1xf32, #tpu.memory_space<vmem>>, vector<1x16x1xf32>
    %158 = vector.shape_cast %157 : vector<1x16x1xf32> to vector<16x1xf32>
    %c2_i32 = arith.constant 2 : i32
    %159 = tpu.dynamic_rotate %154 by %c2_i32 dim 1 : vector<32x128xf32>, i32 -> vector<32x128xf32>
    %c126_i32 = arith.constant 126 : i32
    %160 = tpu.dynamic_rotate %154 by %c126_i32 dim 1 : vector<32x128xf32>, i32 -> vector<32x128xf32>
    %161 = tpu.concatenate %159, %154, %160 in 0 : vector<32x128xf32>, vector<32x128xf32>, vector<32x128xf32> -> vector<96x128xf32>
    %162 = arith.truncf %161 : vector<96x128xf32> to vector<96x128xbf16>
    %cst_89 = arith.constant dense<0.000000e+00> : vector<16x128xf32>
    %163 = tpu.matmul %156, %162, %cst_89 {dimension_numbers = #tpu.dot_dimension_numbers<[1], [0], [0], [1], [0, 0, 1, 1], [], []>} : vector<16x96xbf16>, vector<96x128xbf16>, vector<16x128xf32> -> vector<16x128xf32>
    %164 = vector.broadcast %158 : vector<16x1xf32> to vector<16x128xf32>
    %165 = arith.addf %163, %164 : vector<16x128xf32>
    %cst_90 = arith.constant 0.000000e+00 : f32
    %166 = vector.shape_cast %15 : vector<1x128xi1> to vector<1x128xi1>
    %167 = vector.broadcast %166 : vector<1x128xi1> to vector<16x128xi1>
    %168 = vector.broadcast %cst_90 : f32 to vector<16x128xf32>
    %169 = arith.select %167, %165, %168 : vector<16x128xi1>, vector<16x128xf32>
    %c2_91 = arith.constant 2 : index
    %c0_92 = arith.constant 0 : index
    %c0_93 = arith.constant 0 : index
    %170 = vector.load %arg12[%c2_91, %c0_92, %c0_93] : memref<3x16x1xf32, #tpu.memory_space<vmem>>, vector<1x16x1xf32>
    %171 = vector.shape_cast %170 : vector<1x16x1xf32> to vector<16x1xf32>
    %172 = vector.broadcast %171 : vector<16x1xf32> to vector<16x128xf32>
    %173 = arith.mulf %169, %172 : vector<16x128xf32>
    %c2_94 = arith.constant 2 : index
    %c0_95 = arith.constant 0 : index
    %c0_96 = arith.constant 0 : index
    %174 = vector.load %arg13[%c2_94, %c0_95, %c0_96] : memref<3x16x1xf32, #tpu.memory_space<vmem>>, vector<1x16x1xf32>
    %175 = vector.shape_cast %174 : vector<1x16x1xf32> to vector<16x1xf32>
    %176 = vector.broadcast %175 : vector<16x1xf32> to vector<16x128xf32>
    %177 = arith.addf %173, %176 : vector<16x128xf32>
    %cst_97 = arith.constant 0.000000e+00 : f32
    %178 = vector.broadcast %cst_97 : f32 to vector<16x128xf32>
    %179 = arith.maximumf %177, %178 : vector<16x128xf32>
    %c2_98 = arith.constant 2 : index
    %c0_99 = arith.constant 0 : index
    %c0_100 = arith.constant 0 : index
    %180 = vector.load %arg10[%c2_98, %c0_99, %c0_100] : memref<3x32x16xbf16, #tpu.memory_space<vmem>>, vector<1x32x16xbf16>
    %181 = vector.shape_cast %180 : vector<1x32x16xbf16> to vector<32x16xbf16>
    %c2_101 = arith.constant 2 : index
    %c0_102 = arith.constant 0 : index
    %c0_103 = arith.constant 0 : index
    %182 = vector.load %arg11[%c2_101, %c0_102, %c0_103] : memref<3x32x1xf32, #tpu.memory_space<vmem>>, vector<1x32x1xf32>
    %183 = vector.shape_cast %182 : vector<1x32x1xf32> to vector<32x1xf32>
    %184 = arith.truncf %179 : vector<16x128xf32> to vector<16x128xbf16>
    %cst_104 = arith.constant dense<0.000000e+00> : vector<32x128xf32>
    %185 = tpu.matmul %181, %184, %cst_104 {dimension_numbers = #tpu.dot_dimension_numbers<[1], [0], [0], [1], [0, 0, 1, 1], [], []>} : vector<32x16xbf16>, vector<16x128xbf16>, vector<32x128xf32> -> vector<32x128xf32>
    %186 = vector.broadcast %183 : vector<32x1xf32> to vector<32x128xf32>
    %187 = arith.addf %185, %186 : vector<32x128xf32>
    %cst_105 = arith.constant 0.000000e+00 : f32
    %188 = vector.shape_cast %15 : vector<1x128xi1> to vector<1x128xi1>
    %189 = vector.broadcast %188 : vector<1x128xi1> to vector<32x128xi1>
    %190 = vector.broadcast %cst_105 : f32 to vector<32x128xf32>
    %191 = arith.select %189, %187, %190 : vector<32x128xi1>, vector<32x128xf32>
    %192 = arith.addf %191, %140 : vector<32x128xf32>
    %c0_106 = arith.constant 0 : index
    %c0_107 = arith.constant 0 : index
    %c0_108 = arith.constant 0 : index
    %193 = vector.load %arg14[%c0_106, %c0_107, %c0_108] : memref<1x32x128xf32, #tpu.memory_space<vmem>>, vector<1x32x128xf32>
    %194 = vector.shape_cast %193 : vector<1x32x128xf32> to vector<32x128xf32>
    %195 = vector.shape_cast %192 : vector<32x128xf32> to vector<1x32x128xf32>
    tpu.vector_store %arg14[%c0_106, %c0_107, %c0_108], %195 {strides = array<i32>} : memref<1x32x128xf32, #tpu.memory_space<vmem>>, vector<1x32x128xf32>,
    return
  }
  func.func @transform_1(%arg0: i32, %arg1: i32, %arg2: memref<2xi32, #tpu.memory_space<smem>>) -> (i32, i32) {
    %c0_i32 = arith.constant 0 : i32
    %c0_i32_0 = arith.constant 0 : i32
    %c0_i32_1 = arith.constant 0 : i32
    return %c0_i32, %c0_i32_0 : i32, i32
  }
  func.func @transform_2(%arg0: i32, %arg1: i32, %arg2: memref<2xi32, #tpu.memory_space<smem>>) -> (i32, i32) {
    %c0_i32 = arith.constant 0 : i32
    %c0_i32_0 = arith.constant 0 : i32
    %c0_i32_1 = arith.constant 0 : i32
    return %c0_i32, %c0_i32_0 : i32, i32
  }
  func.func @transform_3(%arg0: i32, %arg1: i32, %arg2: memref<2xi32, #tpu.memory_space<smem>>) -> (i32, i32, i32) {
    %c0_i32 = arith.constant 0 : i32
    %c0_i32_0 = arith.constant 0 : i32
    %c0_i32_1 = arith.constant 0 : i32
    %c0_i32_2 = arith.constant 0 : i32
    return %c0_i32, %c0_i32_0, %c0_i32_1 : i32, i32, i32
  }
  func.func @transform_4(%arg0: i32, %arg1: i32, %arg2: memref<2xi32, #tpu.memory_space<smem>>) -> (i32, i32, i32) {
    %c0_i32 = arith.constant 0 : i32
    %c0_i32_0 = arith.constant 0 : i32
    %c0_i32_1 = arith.constant 0 : i32
    %c0_i32_2 = arith.constant 0 : i32
    return %c0_i32, %c0_i32_0, %c0_i32_1 : i32, i32, i32
  }
  func.func @transform_5(%arg0: i32, %arg1: i32, %arg2: memref<2xi32, #tpu.memory_space<smem>>) -> (i32, i32, i32) {
    %c0_i32 = arith.constant 0 : i32
    %c0_i32_0 = arith.constant 0 : i32
    %c0_i32_1 = arith.constant 0 : i32
    %c0_i32_2 = arith.constant 0 : i32
    return %c0_i32, %c0_i32_0, %c0_i32_1 : i32, i32, i32
  }
  func.func @transform_6(%arg0: i32, %arg1: i32, %arg2: memref<2xi32, #tpu.memory_space<smem>>) -> (i32, i32, i32) {
    %c0_i32 = arith.constant 0 : i32
    %c0_i32_0 = arith.constant 0 : i32
    %c0_i32_1 = arith.constant 0 : i32
    %c0_i32_2 = arith.constant 0 : i32
    return %c0_i32, %c0_i32_0, %c0_i32_1 : i32, i32, i32
  }
  func.func @transform_7(%arg0: i32, %arg1: i32, %arg2: memref<2xi32, #tpu.memory_space<smem>>) -> (i32, i32, i32) {
    %c0_i32 = arith.constant 0 : i32
    %c0_i32_0 = arith.constant 0 : i32
    %c0_i32_1 = arith.constant 0 : i32
    %c0_i32_2 = arith.constant 0 : i32
    return %c0_i32, %c0_i32_0, %c0_i32_1 : i32, i32, i32
  }
  func.func @transform_8(%arg0: i32, %arg1: i32, %arg2: memref<2xi32, #tpu.memory_space<smem>>) -> (i32, i32, i32) {
    %c0_i32 = arith.constant 0 : i32
    %c0_i32_0 = arith.constant 0 : i32
    %c0_i32_1 = arith.constant 0 : i32
    %c0_i32_2 = arith.constant 0 : i32
    return %c0_i32, %c0_i32_0, %c0_i32_1 : i32, i32, i32
  }
  func.func @transform_9(%arg0: i32, %arg1: i32, %arg2: memref<2xi32, #tpu.memory_space<smem>>) -> (i32, i32, i32) {
    %c0_i32 = arith.constant 0 : i32
    %c0_i32_0 = arith.constant 0 : i32
    %c0_i32_1 = arith.constant 0 : i32
    %c0_i32_2 = arith.constant 0 : i32
    return %c0_i32, %c0_i32_0, %c0_i32_1 : i32, i32, i32
  }
  func.func @transform_10(%arg0: i32, %arg1: i32, %arg2: memref<2xi32, #tpu.memory_space<smem>>) -> (i32, i32, i32) {
    %c0_i32 = arith.constant 0 : i32
    %c0_i32_0 = arith.constant 0 : i32
    %c0_i32_1 = arith.constant 0 : i32
    %c0_i32_2 = arith.constant 0 : i32
    return %c0_i32, %c0_i32_0, %c0_i32_1 : i32, i32, i32
  }
  func.func @transform_11(%arg0: i32, %arg1: i32, %arg2: memref<2xi32, #tpu.memory_space<smem>>) -> (i32, i32, i32) {
    %c0_i32 = arith.constant 0 : i32
    %c0_i32_0 = arith.constant 0 : i32
    return %arg0, %c0_i32, %arg1 : i32, i32, i32
  }
}

</mosaic_0001>

<llo_original>
// kernel: tpu_custom_call.1
$region0: #{tpu_custom_call.1}
  #allocation0 [shape = 'u32[]', space=smem, size = 0x4, offset = 0x4, fixed_abs, tag = 'smem constant byte address 0x4 - core index']
  #allocation1 [shape = 'u32[144,128]{1,0:T(1,128)}', space=vmem, size = 0x12000, scoped, tag = 'internal scratch']
  #allocation2 [shape = 'f32[8,128]{1,0:T(8,128)}', space=vmem, size = 0x1000, scoped, tag = 'scratch operand']
  #allocation3 [shape = 's32[1]{0}', space=sflag, size = 0x4, scoped, tag = 'scratch operand']
  #allocation4 [shape = 's32[1]{0}', space=sflag, size = 0x4, scoped, tag = 'scoped memory for tpu_custom_call.1']
  #allocation5 [shape = 'u8[512]{0}', space=smem, size = 0x200, scoped, tag = 'prefetched SMEM operand 0']
  #allocation8 [shape = 's32[]', space=sflag, size = 0x4, offset = 0, fixed_abs, tag = 'sflag constant byte address 0x0 - dummy sync flag']
  %s0 = inlined_call_operand.vmem [shape: s32[2], index: 0, kind: input, shape index: {}]
  %s1 = inlined_call_operand.vmem [shape: f32[2,8,128], index: 1, kind: input, shape index: {}]
  %s2 = inlined_call_operand.vmem [shape: bf16[32,24], index: 2, kind: input, shape index: {}]
  %s3 = inlined_call_operand.vmem [shape: f32[32,1], index: 3, kind: input, shape index: {}]
  %s4 = inlined_call_operand.vmem [shape: bf16[3,16,96], index: 4, kind: input, shape index: {}]
  %s5 = inlined_call_operand.vmem [shape: f32[3,16,1], index: 5, kind: input, shape index: {}]
  %s6 = inlined_call_operand.vmem [shape: f32[3,32,1], index: 6, kind: input, shape index: {}]
  %s7 = inlined_call_operand.vmem [shape: f32[3,32,1], index: 7, kind: input, shape index: {}]
  %s8 = inlined_call_operand.vmem [shape: bf16[3,32,16], index: 8, kind: input, shape index: {}]
  %s9 = inlined_call_operand.vmem [shape: f32[3,32,1], index: 9, kind: input, shape index: {}]
  %s10 = inlined_call_operand.vmem [shape: f32[3,16,1], index: 10, kind: input, shape index: {}]
  %s11 = inlined_call_operand.vmem [shape: f32[3,16,1], index: 11, kind: input, shape index: {}]
  %s12 = inlined_call_operand.hbm [shape: f32[2,32,128], index: 12, kind: output, shape index: {}]
  %s13 = sld [smem:[#allocation0]]
  $region107: #{tpu_custom_call.1} parent=0
    _
  %s15 = ssub.s32 1, %s13
  %s16 = scalar_select 0, %s15, %s13
  %s17 = sshll.u32 %s0, 4
  %s18 = int_to_ptr.vmem [resolvable:$true] %s17
  %20 = dma.vmem_to_smem %s18, 16, [#allocation5], [#allocation4]
  %21 = dma.done [#allocation4], 16
  %22 = sfence
  $region1: #{tpu_custom_call.1} parent=0
    #allocation6 [shape = 'u8[32768]{0}', space=vmem, size = 0x8000, scoped, tag = 'output window, operand 0']
    #allocation7 [shape = 's32[2]{0}', space=sflag, size = 0x8, scoped, tag = 'scoped memory for tpu_custom_call.1']
    %23 = vsyncpa [#allocation7], 0
    %s24 = scalar_lea.sflag [#allocation7], 1
    %25 = vsyncpa %s24, 0
    loop: start=0, step=1, limit=4
    $region2: #{tpu_custom_call.1} parent=1 // loop_pre_header
      _
    $region3: #{tpu_custom_call.1} parent=1 // loop_header
      %s27 = sphi 0, %s31
      %p28 = scmp.ge.s32.totalorder %s27, 4
      %s34 = sphi 0, %s46
      %s35 = sphi 0, %s42
      %s36 = sphi 0, %s34
      %s37 = sphi 0, %s35
      %s38 = sphi 0, %s36
      %s39 = sphi 0, %s37
      %s47 = sphi 0, %s47
      %s49 = sphi 0, %s47
      %s50 = sphi 0, %s49
      %s64 = sphi 0, %s50
      %s68 = sphi 0, %s68
      %s70 = sphi 0, %s68
      %s71 = sphi 0, %s70
      %s85 = sphi 0, %s71
      %s89 = sphi 0, %s89
      %s91 = sphi 0, %s89
      %s92 = sphi 0, %s91
      %s106 = sphi 0, %s92
      %s110 = sphi 0, %s110
      %s112 = sphi 0, %s110
      %s113 = sphi 0, %s112
      %s127 = sphi 0, %s113
      %s131 = sphi 0, %s131
      %s133 = sphi 0, %s131
      %s134 = sphi 0, %s133
      %s148 = sphi 0, %s134
      %s152 = sphi 0, %s152
      %s154 = sphi 0, %s152
      %s155 = sphi 0, %s154
      %s169 = sphi 0, %s155
      %s173 = sphi 0, %s173
      %s175 = sphi 0, %s173
      %s176 = sphi 0, %s175
      %s190 = sphi 0, %s176
      %s194 = sphi 0, %s194
      %s196 = sphi 0, %s194
      %s197 = sphi 0, %s196
      %s211 = sphi 0, %s197
      %s215 = sphi 0, %s215
      %s217 = sphi 0, %s215
      %s218 = sphi 0, %s217
      %s232 = sphi 0, %s218
      %s236 = sphi 0, %s236
      %s238 = sphi 0, %s236
      %s239 = sphi 0, %s238
      %s253 = sphi 0, %s239
      %s261 = sphi 0, %s263
      %s264 = sphi 0, %s261
      %s265 = sphi 0, %s264
      %s281 = sphi 0, %s265
    $region4: #{tpu_custom_call.1} parent=1 // loop_header_branch
      %30 = sbr.rel (%p28) target = $region8
    $region5: #{tpu_custom_call.1} parent=1 // loop_body
      %s32 = ssub.s32 %s27, 1
      %s33 = ssub.s32 %s27, 2
      %s40 = sadd.s32 1, %s35
      %p41 = scmp.ge.s32.totalorder %s40, 1
      %s42 = scalar_select %p41, 0, %s40
      %s43 = sadd.s32 1, %s34
      %s44 = scalar_select %p41, %s43, %s34
      %p45 = scmp.ge.s32.totalorder %s44, 2
      %s46 = scalar_select %p45, 0, %s44
      %s48 = sadd.s32 %s47, 1
      %p51 = scmp.eq.s32.totalorder %s27, 1
      %p52 = scmp.ne.s32.totalorder %s47, %s49
      %p53 = scmp.eq.s32.totalorder %s27, 0
      %p54 = por %p52, %p53
      %p55 = scmp.ne.s32.totalorder %s47, %s49
      %p56 = scmp.eq.s32.totalorder %s32, 1
      %p57 = por %p55, %p56
      %p58 = scmp.ne.s32.totalorder %s49, %s50
      %p59 = scmp.eq.s32.totalorder %s32, 0
      %p60 = por %p58, %p59
      %p61 = scmp.ne.s32.totalorder %s49, %s50
      %p62 = scmp.eq.s32.totalorder %s33, 1
      %p63 = por %p61, %p62
      %p65 = scmp.ne.s32.totalorder %s50, %s64
      %p66 = scmp.eq.s32.totalorder %s33, 0
      %p67 = por %p65, %p66
      %s69 = sadd.s32 %s68, 1
      %p72 = scmp.eq.s32.totalorder %s27, 1
      %p73 = scmp.ne.s32.totalorder %s68, %s70
      %p74 = scmp.eq.s32.totalorder %s27, 0
      %p75 = por %p73, %p74
      %p76 = scmp.ne.s32.totalorder %s68, %s70
      %p77 = scmp.eq.s32.totalorder %s32, 1
      %p78 = por %p76, %p77
      %p79 = scmp.ne.s32.totalorder %s70, %s71
      %p80 = scmp.eq.s32.totalorder %s32, 0
      %p81 = por %p79, %p80
      %p82 = scmp.ne.s32.totalorder %s70, %s71
      %p83 = scmp.eq.s32.totalorder %s33, 1
      %p84 = por %p82, %p83
      %p86 = scmp.ne.s32.totalorder %s71, %s85
      %p87 = scmp.eq.s32.totalorder %s33, 0
      %p88 = por %p86, %p87
      %s90 = sadd.s32 %s89, 1
      %p93 = scmp.eq.s32.totalorder %s27, 1
      %p94 = scmp.ne.s32.totalorder %s89, %s91
      %p95 = scmp.eq.s32.totalorder %s27, 0
      %p96 = por %p94, %p95
      %p97 = scmp.ne.s32.totalorder %s89, %s91
      %p98 = scmp.eq.s32.totalorder %s32, 1
      %p99 = por %p97, %p98
      %p100 = scmp.ne.s32.totalorder %s91, %s92
      %p101 = scmp.eq.s32.totalorder %s32, 0
      %p102 = por %p100, %p101
      %p103 = scmp.ne.s32.totalorder %s91, %s92
      %p104 = scmp.eq.s32.totalorder %s33, 1
      %p105 = por %p103, %p104
      %p107 = scmp.ne.s32.totalorder %s92, %s106
      %p108 = scmp.eq.s32.totalorder %s33, 0
      %p109 = por %p107, %p108
      %s111 = sadd.s32 %s110, 1
      %p114 = scmp.eq.s32.totalorder %s27, 1
      %p115 = scmp.ne.s32.totalorder %s110, %s112
      %p116 = scmp.eq.s32.totalorder %s27, 0
      %p117 = por %p115, %p116
      %p118 = scmp.ne.s32.totalorder %s110, %s112
      %p119 = scmp.eq.s32.totalorder %s32, 1
      %p120 = por %p118, %p119
      %p121 = scmp.ne.s32.totalorder %s112, %s113
      %p122 = scmp.eq.s32.totalorder %s32, 0
      %p123 = por %p121, %p122
      %p124 = scmp.ne.s32.totalorder %s112, %s113
      %p125 = scmp.eq.s32.totalorder %s33, 1
      %p126 = por %p124, %p125
      %p128 = scmp.ne.s32.totalorder %s113, %s127
      %p129 = scmp.eq.s32.totalorder %s33, 0
      %p130 = por %p128, %p129
      %s132 = sadd.s32 %s131, 1
      %p135 = scmp.eq.s32.totalorder %s27, 1
      %p136 = scmp.ne.s32.totalorder %s131, %s133
      %p137 = scmp.eq.s32.totalorder %s27, 0
      %p138 = por %p136, %p137
      %p139 = scmp.ne.s32.totalorder %s131, %s133
      %p140 = scmp.eq.s32.totalorder %s32, 1
      %p141 = por %p139, %p140
      %p142 = scmp.ne.s32.totalorder %s133, %s134
      %p143 = scmp.eq.s32.totalorder %s32, 0
      %p144 = por %p142, %p143
      %p145 = scmp.ne.s32.totalorder %s133, %s134
      %p146 = scmp.eq.s32.totalorder %s33, 1
      %p147 = por %p145, %p146
      %p149 = scmp.ne.s32.totalorder %s134, %s148
      %p150 = scmp.eq.s32.totalorder %s33, 0
      %p151 = por %p149, %p150
      %s153 = sadd.s32 %s152, 1
      %p156 = scmp.eq.s32.totalorder %s27, 1
      %p157 = scmp.ne.s32.totalorder %s152, %s154
      %p158 = scmp.eq.s32.totalorder %s27, 0
      %p159 = por %p157, %p158
      %p160 = scmp.ne.s32.totalorder %s152, %s154
      %p161 = scmp.eq.s32.totalorder %s32, 1
      %p162 = por %p160, %p161
      %p163 = scmp.ne.s32.totalorder %s154, %s155
      %p164 = scmp.eq.s32.totalorder %s32, 0
      %p165 = por %p163, %p164
      %p166 = scmp.ne.s32.totalorder %s154, %s155
      %p167 = scmp.eq.s32.totalorder %s33, 1
      %p168 = por %p166, %p167
      %p170 = scmp.ne.s32.totalorder %s155, %s169
      %p171 = scmp.eq.s32.totalorder %s33, 0
      %p172 = por %p170, %p171
      %s174 = sadd.s32 %s173, 1
      %p177 = scmp.eq.s32.totalorder %s27, 1
      %p178 = scmp.ne.s32.totalorder %s173, %s175
      %p179 = scmp.eq.s32.totalorder %s27, 0
      %p180 = por %p178, %p179
      %p181 = scmp.ne.s32.totalorder %s173, %s175
      %p182 = scmp.eq.s32.totalorder %s32, 1
      %p183 = por %p181, %p182
      %p184 = scmp.ne.s32.totalorder %s175, %s176
      %p185 = scmp.eq.s32.totalorder %s32, 0
      %p186 = por %p184, %p185
      %p187 = scmp.ne.s32.totalorder %s175, %s176
      %p188 = scmp.eq.s32.totalorder %s33, 1
      %p189 = por %p187, %p188
      %p191 = scmp.ne.s32.totalorder %s176, %s190
      %p192 = scmp.eq.s32.totalorder %s33, 0
      %p193 = por %p191, %p192
      %s195 = sadd.s32 %s194, 1
      %p198 = scmp.eq.s32.totalorder %s27, 1
      %p199 = scmp.ne.s32.totalorder %s194, %s196
      %p200 = scmp.eq.s32.totalorder %s27, 0
      %p201 = por %p199, %p200
      %p202 = scmp.ne.s32.totalorder %s194, %s196
      %p203 = scmp.eq.s32.totalorder %s32, 1
      %p204 = por %p202, %p203
      %p205 = scmp.ne.s32.totalorder %s196, %s197
      %p206 = scmp.eq.s32.totalorder %s32, 0
      %p207 = por %p205, %p206
      %p208 = scmp.ne.s32.totalorder %s196, %s197
      %p209 = scmp.eq.s32.totalorder %s33, 1
      %p210 = por %p208, %p209
      %p212 = scmp.ne.s32.totalorder %s197, %s211
      %p213 = scmp.eq.s32.totalorder %s33, 0
      %p214 = por %p212, %p213
      %s216 = sadd.s32 %s215, 1
      %p219 = scmp.eq.s32.totalorder %s27, 1
      %p220 = scmp.ne.s32.totalorder %s215, %s217
      %p221 = scmp.eq.s32.totalorder %s27, 0
      %p222 = por %p220, %p221
      %p223 = scmp.ne.s32.totalorder %s215, %s217
      %p224 = scmp.eq.s32.totalorder %s32, 1
      %p225 = por %p223, %p224
      %p226 = scmp.ne.s32.totalorder %s217, %s218
      %p227 = scmp.eq.s32.totalorder %s32, 0
      %p228 = por %p226, %p227
      %p229 = scmp.ne.s32.totalorder %s217, %s218
      %p230 = scmp.eq.s32.totalorder %s33, 1
      %p231 = por %p229, %p230
      %p233 = scmp.ne.s32.totalorder %s218, %s232
      %p234 = scmp.eq.s32.totalorder %s33, 0
      %p235 = por %p233, %p234
      %s237 = sadd.s32 %s236, 1
      %p240 = scmp.eq.s32.totalorder %s27, 1
      %p241 = scmp.ne.s32.totalorder %s236, %s238
      %p242 = scmp.eq.s32.totalorder %s27, 0
      %p243 = por %p241, %p242
      %p244 = scmp.ne.s32.totalorder %s236, %s238
      %p245 = scmp.eq.s32.totalorder %s32, 1
      %p246 = por %p244, %p245
      %p247 = scmp.ne.s32.totalorder %s238, %s239
      %p248 = scmp.eq.s32.totalorder %s32, 0
      %p249 = por %p247, %p248
      %p250 = scmp.ne.s32.totalorder %s238, %s239
      %p251 = scmp.eq.s32.totalorder %s33, 1
      %p252 = por %p250, %p251
      %p254 = scmp.ne.s32.totalorder %s239, %s253
      %p255 = scmp.eq.s32.totalorder %s33, 0
      %p256 = por %p254, %p255
      %s257 = ssub.s32 %s34, %s46
      %s258 = ssub.s32 %s35, %s42
      %s259 = sor.u32 %s257, %s258
      %p260 = scmp.eq.s32.totalorder %s259, 0
      %s262 = sadd.s32 %s261, 1
      %s263 = scalar_select %p260, %s261, %s262
      %p266 = pneg %p260
      %p267 = scmp.eq.s32.totalorder %s27, 1
      %p268 = por %p266, %p267
      %p269 = scmp.ne.s32.totalorder %s261, %s264
      %p270 = scmp.eq.s32.totalorder %s27, 0
      %p271 = por %p269, %p270
      %p272 = scmp.ne.s32.totalorder %s261, %s264
      %p273 = scmp.eq.s32.totalorder %s32, 1
      %p274 = por %p272, %p273
      %p275 = scmp.ne.s32.totalorder %s264, %s265
      %p276 = scmp.eq.s32.totalorder %s32, 0
      %p277 = por %p275, %p276
      %p278 = scmp.ne.s32.totalorder %s264, %s265
      %p279 = scmp.eq.s32.totalorder %s33, 1
      %p280 = por %p278, %p279
      %p282 = scmp.ne.s32.totalorder %s265, %s281
      %p283 = scmp.eq.s32.totalorder %s33, 0
      %p284 = por %p282, %p283
      %p285 = scmp.le.s32.totalorder 1, %s27
      %p286 = scmp.lt.s32.totalorder %s27, 3
      %p287 = pnand %p285, %p286
      %p288 = pneg %p287
      // Predicated region
      $region9: #{tpu_custom_call.1} parent=5 // pred_check
        _
      $region10: #{tpu_custom_call.1} parent=5 // pred_check_branch
        %290 = sbr.rel (%p287) target = $region12
      $region11: #{tpu_custom_call.1} parent=5 // pred_region
        %s291 = ssub.s32 %s27, 1
        // Predicated region
        $region13: #{tpu_custom_call.1} parent=11 // pred_check
          %p292 = pneg %p60
        $region14: #{tpu_custom_call.1} parent=11 // pred_check_branch
          %294 = sbr.rel (%p292) target = $region16
        $region15: #{tpu_custom_call.1} parent=11 // pred_region
          _
        $region16: #{tpu_custom_call.1} parent=11 // pred_fallthru
          _
        // Predicated region
        $region17: #{tpu_custom_call.1} parent=11 // pred_check
          %p295 = pneg %p81
        $region18: #{tpu_custom_call.1} parent=11 // pred_check_branch
          %297 = sbr.rel (%p295) target = $region20
        $region19: #{tpu_custom_call.1} parent=11 // pred_region
          _
        $region20: #{tpu_custom_call.1} parent=11 // pred_fallthru
          _
        // Predicated region
        $region21: #{tpu_custom_call.1} parent=11 // pred_check
          %p298 = pneg %p102
        $region22: #{tpu_custom_call.1} parent=11 // pred_check_branch
          %300 = sbr.rel (%p298) target = $region24
        $region23: #{tpu_custom_call.1} parent=11 // pred_region
          _
        $region24: #{tpu_custom_call.1} parent=11 // pred_fallthru
          _
        // Predicated region
        $region25: #{tpu_custom_call.1} parent=11 // pred_check
          %p301 = pneg %p123
        $region26: #{tpu_custom_call.1} parent=11 // pred_check_branch
          %303 = sbr.rel (%p301) target = $region28
        $region27: #{tpu_custom_call.1} parent=11 // pred_region
          _
        $region28: #{tpu_custom_call.1} parent=11 // pred_fallthru
          _
        // Predicated region
        $region29: #{tpu_custom_call.1} parent=11 // pred_check
          %p304 = pneg %p144
        $region30: #{tpu_custom_call.1} parent=11 // pred_check_branch
          %306 = sbr.rel (%p304) target = $region32
        $region31: #{tpu_custom_call.1} parent=11 // pred_region
          _
        $region32: #{tpu_custom_call.1} parent=11 // pred_fallthru
          _
        // Predicated region
        $region33: #{tpu_custom_call.1} parent=11 // pred_check
          %p307 = pneg %p165
        $region34: #{tpu_custom_call.1} parent=11 // pred_check_branch
          %309 = sbr.rel (%p307) target = $region36
        $region35: #{tpu_custom_call.1} parent=11 // pred_region
          _
        $region36: #{tpu_custom_call.1} parent=11 // pred_fallthru
          _
        // Predicated region
        $region37: #{tpu_custom_call.1} parent=11 // pred_check
          %p310 = pneg %p186
        $region38: #{tpu_custom_call.1} parent=11 // pred_check_branch
          %312 = sbr.rel (%p310) target = $region40
        $region39: #{tpu_custom_call.1} parent=11 // pred_region
          _
        $region40: #{tpu_custom_call.1} parent=11 // pred_fallthru
          _
        // Predicated region
        $region41: #{tpu_custom_call.1} parent=11 // pred_check
          %p313 = pneg %p207
        $region42: #{tpu_custom_call.1} parent=11 // pred_check_branch
          %315 = sbr.rel (%p313) target = $region44
        $region43: #{tpu_custom_call.1} parent=11 // pred_region
          _
        $region44: #{tpu_custom_call.1} parent=11 // pred_fallthru
          _
        // Predicated region
        $region45: #{tpu_custom_call.1} parent=11 // pred_check
          %p316 = pneg %p228
        $region46: #{tpu_custom_call.1} parent=11 // pred_check_branch
          %318 = sbr.rel (%p316) target = $region48
        $region47: #{tpu_custom_call.1} parent=11 // pred_region
          _
        $region48: #{tpu_custom_call.1} parent=11 // pred_fallthru
          _
        // Predicated region
        $region49: #{tpu_custom_call.1} parent=11 // pred_check
          %p319 = pneg %p249
        $region50: #{tpu_custom_call.1} parent=11 // pred_check_branch
          %321 = sbr.rel (%p319) target = $region52
        $region51: #{tpu_custom_call.1} parent=11 // pred_region
          _
        $region52: #{tpu_custom_call.1} parent=11 // pred_fallthru
          _
      $region12: #{tpu_custom_call.1} parent=5 // pred_fallthru
        _
      %p322 = scmp.lt.s32.totalorder %s27, 2
      // Predicated region
      $region53: #{tpu_custom_call.1} parent=5 // pred_check
        %p323 = pneg %p322
      $region54: #{tpu_custom_call.1} parent=5 // pred_check_branch
        %325 = sbr.rel (%p323) target = $region56
      $region55: #{tpu_custom_call.1} parent=5 // pred_region
        _
      $region56: #{tpu_custom_call.1} parent=5 // pred_fallthru
        _
      %p326 = scmp.le.s32.totalorder 1, %s27
      %p327 = scmp.lt.s32.totalorder %s27, 3
      %p328 = pnand %p326, %p327
      %p329 = pneg %p328
      // Predicated region
      $region57: #{tpu_custom_call.1} parent=5 // pred_check
        _
      $region58: #{tpu_custom_call.1} parent=5 // pred_check_branch
        %331 = sbr.rel (%p328) target = $region60
      $region59: #{tpu_custom_call.1} parent=5 // pred_region
        %s332 = ssub.s32 %s27, 1
        %p333 = pneg %p60
        %p334 = pneg %p57
        %p335 = pneg %p81
        %p336 = pneg %p78
        %p337 = pneg %p102
        %p338 = pneg %p99
        %p339 = pneg %p123
        %p340 = pneg %p120
        %p341 = pneg %p144
        %p342 = pneg %p141
        %p343 = pneg %p165
        %p344 = pneg %p162
        %p345 = pneg %p186
        %p346 = pneg %p183
        %p347 = pneg %p207
        %p348 = pneg %p204
        %p349 = pneg %p228
        %p350 = pneg %p225
        %p351 = pneg %p249
        %p352 = pneg %p246
        %p353 = pneg %p277
        %p354 = pneg %p274
        %s355 = sand.u32 %s264, 1
        %s356 = scalar_lea.sflag [#allocation7], %s355
        %s357 = sand.u32 %s264, 1
        %s358 = smul.addr %s357, 32
        %s359 = scalar_lea.vmem [#allocation6], %s358
        %s361 = smul.u32 %s37, 128
        %s362 = sshra.s32 %s361, 7
        %s363 = sand.u32 %s361, 127
        %s364 = smul.u32 %s36, 8
        %s365 = sadd.s32 %s362, %s364
        %s366 = scalar_lea.vmem %s1, %s365
        %p368 = scmp.lt.u32.totalorder 8, 8
        %p369 = pneg %p368
        // Predicated region
        $region61: #{tpu_custom_call.1} parent=59 // pred_check
          _
        $region62: #{tpu_custom_call.1} parent=59 // pred_check_branch
          %371 = sbr.rel (%p368) target = $region64
        $region63: #{tpu_custom_call.1} parent=59 // pred_region
          %s386 = sand.u32 8, 7
          %p387 = scmp.eq.s32.totalorder %s386, 0
          // Predicated region
          $region76: #{tpu_custom_call.1} parent=63 // pred_check
            %p388 = pneg %p387
          $region77: #{tpu_custom_call.1} parent=63 // pred_check_branch
            %390 = sbr.rel (%p388) target = $region79
          $region78: #{tpu_custom_call.1} parent=63 // pred_region
            loop: start=0, step=1, limit=1
            $region80: #{tpu_custom_call.1} parent=78 // loop_pre_header
              _
            $region81: #{tpu_custom_call.1} parent=78 // loop_header
              %s392 = sphi 0, %s396
              %p393 = scmp.ge.s32.totalorder %s392, 1
              %s397 = sphi %s366, %s366
              %s398 = sphi [#allocation2], [#allocation2]
            $region82: #{tpu_custom_call.1} parent=78 // loop_header_branch
              %395 = sbr.rel (%p393) target = $region86
            $region83: #{tpu_custom_call.1} parent=78 // loop_body
              %v399 = vld [vmem:[%s397] sm:$0xff]
              %400 = vst [vmem:[%s398] sm:$0xff] %v399
            $region84: #{tpu_custom_call.1} parent=78 // loop_footer
              %s396 = sadd.s32 1, %s392
            $region85: #{tpu_custom_call.1} parent=78 // loop_footer_branch
              %391 = sbr.rel target = $region81
            $region86: #{tpu_custom_call.1} parent=78 // loop_exit
              _
          $region79: #{tpu_custom_call.1} parent=63 // pred_fallthru
            _
          %p401 = pneg %p387
          // Predicated region
          $region87: #{tpu_custom_call.1} parent=63 // pred_check
            _
          $region88: #{tpu_custom_call.1} parent=63 // pred_check_branch
            %403 = sbr.rel (%p387) target = $region90
          $region89: #{tpu_custom_call.1} parent=63 // pred_region
            %s404 = sand.u32 8, 7
          $region90: #{tpu_custom_call.1} parent=63 // pred_fallthru
            _
        $region64: #{tpu_custom_call.1} parent=59 // pred_fallthru
          _
        // Predicated region
        $region65: #{tpu_custom_call.1} parent=59 // pred_check
          %p372 = pneg %p368
        $region66: #{tpu_custom_call.1} parent=59 // pred_check_branch
          %374 = sbr.rel (%p372) target = $region68
        $region67: #{tpu_custom_call.1} parent=59 // pred_region
          %s375 = sshllo.u32 0, 8
          loop: start=0, step=1, limit=1
          $region69: #{tpu_custom_call.1} parent=67 // loop_pre_header
            _
          $region70: #{tpu_custom_call.1} parent=67 // loop_header
            %s377 = sphi 0, %s381
            %p378 = scmp.ge.s32.totalorder %s377, 1
            %s382 = sphi %s366, %s366
            %s383 = sphi [#allocation2], [#allocation2]
          $region71: #{tpu_custom_call.1} parent=67 // loop_header_branch
            %380 = sbr.rel (%p378) target = $region75
          $region72: #{tpu_custom_call.1} parent=67 // loop_body
            %v384 = vld [vmem:[%s382] sm:%s375]
            %385 = vst [vmem:[%s383] sm:%s375] %v384
          $region73: #{tpu_custom_call.1} parent=67 // loop_footer
            %s381 = sadd.s32 1, %s377
          $region74: #{tpu_custom_call.1} parent=67 // loop_footer_branch
            %376 = sbr.rel target = $region70
          $region75: #{tpu_custom_call.1} parent=67 // loop_exit
            _
        $region68: #{tpu_custom_call.1} parent=59 // pred_fallthru
          _
        // Predicated region
        $region91: #{tpu_custom_call.1} parent=59 // pred_check
          _
        $region92: #{tpu_custom_call.1} parent=59 // pred_check_branch
          %407 = sbr.rel (0) target = $region94
        $region93: #{tpu_custom_call.1} parent=59 // pred_region
          %408 = vsyncadd [#allocation3], 128
        $region94: #{tpu_custom_call.1} parent=59 // pred_fallthru
          _
        %v409 = vlaneseq
        %v410 = vand.u32 %v409, 127
        %v411 = vstv %s361
        %v412 = vadd.s32 %v410, %v411
        %s413 = sld [smem:[#allocation5 + %s36]]
        %vm414 = vcmp.ge.s32.totalorder %v412, 0
        %v415 = vstv %s413
        %vm416 = vcmp.lt.s32.totalorder %v412, %v415
        %vm417 = vmand %vm414, %vm416
        %vm418 = vcmp.lt.s32.totalorder %v412, 16
        %vm419 = vmand %vm414, %vm418
        %s420 = smul.u32 8, 1
        %s421 = sshll.u32 %s420, 4
        %422 = dma.done [#allocation3], %s421
        %v423 = vld [vmem:[#allocation2] sm:$0xff]
        %v424 = vld [vmem:[%s2] sm:$0xf]
        %v425 = vld [vmem:[%s2 + $0x4] sm:$0xf]
        %v426 = vld [vmem:[%s2 + $0x8] sm:$0xf]
        %v427 = vld [vmem:[%s2 + $0xc] sm:$0xf]
        %v428 = vld [vmem:[%s3] sm:$0xff]
        %v429 = vld [vmem:[%s3 + $0x8] sm:$0xff]
        %v430 = vld [vmem:[%s3 + $0x10] sm:$0xff]
        %v431 = vld [vmem:[%s3 + $0x18] sm:$0xff]
        %432 = vrot.lane.b32.xlu0 %v423, 1
        %v433 = vpop.permute.xlu0 %432
        %434 = vrot.lane.b32.xlu0 %v423, 127
        %v435 = vpop.permute.xlu0 %434
        %v436 = vpack.c.bf16 %v423, %v433
        %v437 = vpack.c.bf16 %v435, %v435
        %439 = vset.pattern.permute.xlu0 0
        %440 = vperm.xlu0 %439, %v428
        %v441 = vpop.permute.xlu0 %440
        %444 = vset.pattern.permute.xlu0 0
        %445 = vperm.xlu0 %444, %v429
        %v446 = vpop.permute.xlu0 %445
        %449 = vset.pattern.permute.xlu0 0
        %450 = vperm.xlu0 %449, %v430
        %v451 = vpop.permute.xlu0 %450
        %454 = vset.pattern.permute.xlu0 0
        %455 = vperm.xlu0 %454, %v431
        %v456 = vpop.permute.xlu0 %455
        %v462 = vunpack.c.l.b16 %v424
        %v463 = vunpack.c.l.b16 %v425
        %v464 = vunpack.c.l.b16 %v426
        %v465 = vunpack.c.l.b16 %v427
        %v466 = vpack.c.b16 %v463, %v462
        %v467 = vpack.c.b16 %v465, %v464
        %vm468 = vcmask 195584
        %v470 = vsel %vm468, %v466, 0
        %v473 = vsel %vm468, %v467, 0
        %vm475 = vcmask 1043456
        %v477 = vsel %vm475, %v437, 0
        %479 = vmatprep.subr.bf16.mxu0 0
        %480 = vmatpush1.bf16.msra.mxu0 %v436
        %481 = vmatprep.subr.bf16.mxu0 0
        %482 = vmatpush1.bf16.msra.mxu0 %v477
        %483 = vmatprep.subr.bf16.mxu0 0
        %484 = vmatpush1.bf16.msra.mxu0 0
        %485 = vmatprep.subr.bf16.mxu0 0
        %486 = vmatpush1.bf16.msra.mxu0 0
        %487 = vmatprep.subr.bf16.mxu0 0
        %488 = vmatpush1.bf16.msra.mxu0 0
        %489 = vmatprep.subr.bf16.mxu0 0
        %490 = vmatpush1.bf16.msra.mxu0 0
        %491 = vmatprep.subr.bf16.mxu0 0
        %492 = vmatpush1.bf16.msra.mxu0 0
        %493 = vmatprep.subr.bf16.mxu0 0
        %494 = vmatpush1.bf16.msra.mxu0 0
        %495 = vmatprep.subr.bf16.mxu0 0
        %496 = vmatpush1.bf16.msra.mxu0 0
        %497 = vmatprep.subr.bf16.mxu0 0
        %498 = vmatpush1.bf16.msra.mxu0 0
        %499 = vmatprep.subr.bf16.mxu0 0
        %500 = vmatpush1.bf16.msra.mxu0 0
        %501 = vmatprep.subr.bf16.mxu0 0
        %502 = vmatpush1.bf16.msra.mxu0 0
        %503 = vmatprep.subr.bf16.mxu0 0
        %504 = vmatpush1.bf16.msra.mxu0 0
        %505 = vmatprep.subr.bf16.mxu0 0
        %506 = vmatpush1.bf16.msra.mxu0 0
        %507 = vmatprep.subr.bf16.mxu0 0
        %508 = vmatpush1.bf16.msra.mxu0 0
        %509 = vmatprep.subr.bf16.mxu0 0
        %510 = vmatpush1.bf16.msra.mxu0 0
        %511 = vmatprep.mubr.bf16.mxu0 0
        %512 = vmatmul.mubr.bf16.gmra.mrb[0].mxu0 %v470
        %v513 = vpop.f32.mrb[0].mxu0
        %v514 = vadd.f32 %v441, %v513
        %v515 = vpop.f32.mrb[0].mxu0
        %v516 = vpop.f32.mrb[0].mxu0
        %v517 = vadd.f32 %v446, %v516
        %v518 = vpop.f32.mrb[0].mxu0
        %519 = vmatprep.mubr.bf16.mxu0 0
        %520 = vmatmul.mubr.bf16.gmra.mrb[0].mxu0 %v473
        %v521 = vpop.f32.mrb[0].mxu0
        %v522 = vadd.f32 %v451, %v521
        %v523 = vpop.f32.mrb[0].mxu0
        %v524 = vpop.f32.mrb[0].mxu0
        %v525 = vadd.f32 %v456, %v524
        %v526 = vpop.f32.mrb[0].mxu0
        %527 = vdwg.mxu0
        %v528 = vsel %vm417, 1, 0
        %vm529 = vcmp.eq.s32.totalorder %v528, 1
        %v530 = vsel %vm529, %v514, 0.0
        %v531 = vsel %vm529, %v517, 0.0
        %v532 = vsel %vm529, %v522, 0.0
        %v533 = vsel %vm529, %v525, 0.0
        %v534 = vld [vmem:[%s6] sm:$0xff]
        %v535 = vld [vmem:[%s6 + $0x8] sm:$0xff]
        %v536 = vld [vmem:[%s6 + $0x10] sm:$0xff]
        %v537 = vld [vmem:[%s6 + $0x18] sm:$0xff]
        %539 = vset.pattern.permute.xlu0 0
        %540 = vperm.xlu0 %539, %v534
        %v541 = vpop.permute.xlu0 %540
        %544 = vset.pattern.permute.xlu0 0
        %545 = vperm.xlu0 %544, %v535
        %v546 = vpop.permute.xlu0 %545
        %549 = vset.pattern.permute.xlu0 0
        %550 = vperm.xlu0 %549, %v536
        %v551 = vpop.permute.xlu0 %550
        %554 = vset.pattern.permute.xlu0 0
        %555 = vperm.xlu0 %554, %v537
        %v556 = vpop.permute.xlu0 %555
        %v558 = vmul.f32 %v530, %v541
        %v559 = vmul.f32 %v531, %v546
        %v560 = vmul.f32 %v532, %v551
        %v561 = vmul.f32 %v533, %v556
        %v562 = vld [vmem:[%s7] sm:$0xff]
        %v563 = vld [vmem:[%s7 + $0x8] sm:$0xff]
        %v564 = vld [vmem:[%s7 + $0x10] sm:$0xff]
        %v565 = vld [vmem:[%s7 + $0x18] sm:$0xff]
        %567 = vset.pattern.permute.xlu0 0
        %568 = vperm.xlu0 %567, %v562
        %v569 = vpop.permute.xlu0 %568
        %572 = vset.pattern.permute.xlu0 0
        %573 = vperm.xlu0 %572, %v563
        %v574 = vpop.permute.xlu0 %573
        %577 = vset.pattern.permute.xlu0 0
        %578 = vperm.xlu0 %577, %v564
        %v579 = vpop.permute.xlu0 %578
        %582 = vset.pattern.permute.xlu0 0
        %583 = vperm.xlu0 %582, %v565
        %v584 = vpop.permute.xlu0 %583
        %v586 = vadd.f32 %v558, %v569
        %v587 = vadd.f32 %v559, %v574
        %v588 = vadd.f32 %v560, %v579
        %v589 = vadd.f32 %v561, %v584
        %v590 = vmax.f32 %v586, 0.0
        %v591 = vmax.f32 %v587, 0.0
        %v592 = vmax.f32 %v588, 0.0
        %v593 = vmax.f32 %v589, 0.0
        %v594 = vsel %vm419, 1, 0
        %vm595 = vcmp.eq.s32.totalorder %v594, 1
        %v596 = vsel %vm595, %v590, 0.0
        %v597 = vsel %vm595, %v591, 0.0
        %v598 = vsel %vm595, %v592, 0.0
        %v599 = vsel %vm595, %v593, 0.0
        %v600 = vld [vmem:[%s4] sm:$0xf]
        %v601 = vld [vmem:[%s4 + $0x4] sm:$0xf]
        %v602 = vld [vmem:[%s5] sm:$0xff]
        %v603 = vld [vmem:[%s5 + $0x8] sm:$0xff]
        %604 = vrot.lane.b32.xlu0 %v596, 1
        %v605 = vpop.permute.xlu0 %604
        %606 = vrot.lane.b32.xlu0 %v597, 1
        %v607 = vpop.permute.xlu0 %606
        %608 = vrot.lane.b32.xlu0 %v598, 1
        %v609 = vpop.permute.xlu0 %608
        %610 = vrot.lane.b32.xlu0 %v599, 1
        %v611 = vpop.permute.xlu0 %610
        %612 = vrot.lane.b32.xlu0 %v596, 127
        %v613 = vpop.permute.xlu0 %612
        %614 = vrot.lane.b32.xlu0 %v597, 127
        %v615 = vpop.permute.xlu0 %614
        %616 = vrot.lane.b32.xlu0 %v598, 127
        %v617 = vpop.permute.xlu0 %616
        %618 = vrot.lane.b32.xlu0 %v599, 127
        %v619 = vpop.permute.xlu0 %618
        %v620 = vpack.c.bf16 %v607, %v605
        %v621 = vpack.c.bf16 %v611, %v609
        %v622 = vpack.c.bf16 %v597, %v596
        %v623 = vpack.c.bf16 %v599, %v598
        %v624 = vpack.c.bf16 %v615, %v613
        %v625 = vpack.c.bf16 %v619, %v617
        %627 = vset.pattern.permute.xlu0 0
        %628 = vperm.xlu0 %627, %v602
        %v629 = vpop.permute.xlu0 %628
        %632 = vset.pattern.permute.xlu0 0
        %633 = vperm.xlu0 %632, %v603
        %v634 = vpop.permute.xlu0 %633
        %v638 = vunpack.c.l.b16 %v600
        %v639 = vunpack.c.l.b16 %v601
        %v640 = vpack.c.b16 %v639, %v638
        %vm641 = vcmask 785408
        %v643 = vsel %vm641, %v640, 0
        %645 = vmatprep.subr.bf16.mxu0 0
        %646 = vmatpush1.bf16.msra.mxu0 %v620
        %647 = vmatprep.subr.bf16.mxu0 0
        %648 = vmatpush1.bf16.msra.mxu0 %v621
        %649 = vmatprep.subr.bf16.mxu0 0
        %650 = vmatpush1.bf16.msra.mxu0 %v622
        %651 = vmatprep.subr.bf16.mxu0 0
        %652 = vmatpush1.bf16.msra.mxu0 %v623
        %653 = vmatprep.subr.bf16.mxu0 0
        %654 = vmatpush1.bf16.msra.mxu0 %v624
        %655 = vmatprep.subr.bf16.mxu0 0
        %656 = vmatpush1.bf16.msra.mxu0 %v625
        %657 = vmatprep.subr.bf16.mxu0 0
        %658 = vmatpush1.bf16.msra.mxu0 0
        %659 = vmatprep.subr.bf16.mxu0 0
        %660 = vmatpush1.bf16.msra.mxu0 0
        %661 = vmatprep.subr.bf16.mxu0 0
        %662 = vmatpush1.bf16.msra.mxu0 0
        %663 = vmatprep.subr.bf16.mxu0 0
        %664 = vmatpush1.bf16.msra.mxu0 0
        %665 = vmatprep.subr.bf16.mxu0 0
        %666 = vmatpush1.bf16.msra.mxu0 0
        %667 = vmatprep.subr.bf16.mxu0 0
        %668 = vmatpush1.bf16.msra.mxu0 0
        %669 = vmatprep.subr.bf16.mxu0 0
        %670 = vmatpush1.bf16.msra.mxu0 0
        %671 = vmatprep.subr.bf16.mxu0 0
        %672 = vmatpush1.bf16.msra.mxu0 0
        %673 = vmatprep.subr.bf16.mxu0 0
        %674 = vmatpush1.bf16.msra.mxu0 0
        %675 = vmatprep.subr.bf16.mxu0 0
        %676 = vmatpush1.bf16.msra.mxu0 0
        %677 = vmatprep.mubr.bf16.mxu0 0
        %678 = vmatmul.mubr.bf16.gmra.mrb[0].mxu0 %v643
        %v679 = vpop.f32.mrb[0].mxu0
        %v680 = vadd.f32 %v629, %v679
        %v681 = vpop.f32.mrb[0].mxu0
        %v682 = vpop.f32.mrb[0].mxu0
        %v683 = vadd.f32 %v634, %v682
        %v684 = vpop.f32.mrb[0].mxu0
        %685 = vdwg.mxu0
        %v686 = vsel %vm529, %v680, 0.0
        %v687 = vsel %vm529, %v683, 0.0
        %v688 = vld [vmem:[%s10] sm:$0xff]
        %v689 = vld [vmem:[%s10 + $0x8] sm:$0xff]
        %691 = vset.pattern.permute.xlu0 0
        %692 = vperm.xlu0 %691, %v688
        %v693 = vpop.permute.xlu0 %692
        %696 = vset.pattern.permute.xlu0 0
        %697 = vperm.xlu0 %696, %v689
        %v698 = vpop.permute.xlu0 %697
        %v700 = vmul.f32 %v686, %v693
        %v701 = vmul.f32 %v687, %v698
        %v702 = vld [vmem:[%s11] sm:$0xff]
        %v703 = vld [vmem:[%s11 + $0x8] sm:$0xff]
        %705 = vset.pattern.permute.xlu0 0
        %706 = vperm.xlu0 %705, %v702
        %v707 = vpop.permute.xlu0 %706
        %710 = vset.pattern.permute.xlu0 0
        %711 = vperm.xlu0 %710, %v703
        %v712 = vpop.permute.xlu0 %711
        %v714 = vadd.f32 %v700, %v707
        %v715 = vadd.f32 %v701, %v712
        %v716 = vmax.f32 %v714, 0.0
        %v717 = vmax.f32 %v715, 0.0
        %v718 = vld [vmem:[%s8] sm:$0xf]
        %v719 = vld [vmem:[%s8 + $0x4] sm:$0xf]
        %v720 = vld [vmem:[%s8 + $0x8] sm:$0xf]
        %v721 = vld [vmem:[%s8 + $0xc] sm:$0xf]
        %v722 = vld [vmem:[%s9] sm:$0xff]
        %v723 = vld [vmem:[%s9 + $0x8] sm:$0xff]
        %v724 = vld [vmem:[%s9 + $0x10] sm:$0xff]
        %v725 = vld [vmem:[%s9 + $0x18] sm:$0xff]
        %v726 = vpack.c.bf16 %v717, %v716
        %728 = vset.pattern.permute.xlu0 0
        %729 = vperm.xlu0 %728, %v722
        %v730 = vpop.permute.xlu0 %729
        %733 = vset.pattern.permute.xlu0 0
        %734 = vperm.xlu0 %733, %v723
        %v735 = vpop.permute.xlu0 %734
        %738 = vset.pattern.permute.xlu0 0
        %739 = vperm.xlu0 %738, %v724
        %v740 = vpop.permute.xlu0 %739
        %743 = vset.pattern.permute.xlu0 0
        %744 = vperm.xlu0 %743, %v725
        %v745 = vpop.permute.xlu0 %744
        %v751 = vunpack.c.l.b16 %v718
        %v752 = vunpack.c.l.b16 %v719
        %v753 = vunpack.c.l.b16 %v720
        %v754 = vunpack.c.l.b16 %v721
        %v755 = vpack.c.b16 %v752, %v751
        %v756 = vpack.c.b16 %v754, %v753
        %vm757 = vcmask 130048
        %v759 = vsel %vm757, %v755, 0
        %v762 = vsel %vm757, %v756, 0
        %764 = vmatprep.subr.bf16.mxu0 0
        %765 = vmatpush1.bf16.msra.mxu0 %v726
        %766 = vmatprep.subr.bf16.mxu0 0
        %767 = vmatpush1.bf16.msra.mxu0 0
        %768 = vmatprep.subr.bf16.mxu0 0
        %769 = vmatpush1.bf16.msra.mxu0 0
        %770 = vmatprep.subr.bf16.mxu0 0
        %771 = vmatpush1.bf16.msra.mxu0 0
        %772 = vmatprep.subr.bf16.mxu0 0
        %773 = vmatpush1.bf16.msra.mxu0 0
        %774 = vmatprep.subr.bf16.mxu0 0
        %775 = vmatpush1.bf16.msra.mxu0 0
        %776 = vmatprep.subr.bf16.mxu0 0
        %777 = vmatpush1.bf16.msra.mxu0 0
        %778 = vmatprep.subr.bf16.mxu0 0
        %779 = vmatpush1.bf16.msra.mxu0 0
        %780 = vmatprep.subr.bf16.mxu0 0
        %781 = vmatpush1.bf16.msra.mxu0 0
        %782 = vmatprep.subr.bf16.mxu0 0
        %783 = vmatpush1.bf16.msra.mxu0 0
        %784 = vmatprep.subr.bf16.mxu0 0
        %785 = vmatpush1.bf16.msra.mxu0 0
        %786 = vmatprep.subr.bf16.mxu0 0
        %787 = vmatpush1.bf16.msra.mxu0 0
        %788 = vmatprep.subr.bf16.mxu0 0
        %789 = vmatpush1.bf16.msra.mxu0 0
        %790 = vmatprep.subr.bf16.mxu0 0
        %791 = vmatpush1.bf16.msra.mxu0 0
        %792 = vmatprep.subr.bf16.mxu0 0
        %793 = vmatpush1.bf16.msra.mxu0 0
        %794 = vmatprep.subr.bf16.mxu0 0
        %795 = vmatpush1.bf16.msra.mxu0 0
        %796 = vmatprep.mubr.bf16.mxu0 0
        %797 = vmatmul.mubr.bf16.gmra.mrb[0].mxu0 %v759
        %v798 = vpop.f32.mrb[0].mxu0
        %v799 = vadd.f32 %v730, %v798
        %v800 = vpop.f32.mrb[0].mxu0
        %v801 = vpop.f32.mrb[0].mxu0
        %v802 = vadd.f32 %v735, %v801
        %v803 = vpop.f32.mrb[0].mxu0
        %804 = vmatprep.mubr.bf16.mxu0 0
        %805 = vmatmul.mubr.bf16.gmra.mrb[0].mxu0 %v762
        %v806 = vpop.f32.mrb[0].mxu0
        %v807 = vadd.f32 %v740, %v806
        %v808 = vpop.f32.mrb[0].mxu0
        %v809 = vpop.f32.mrb[0].mxu0
        %v810 = vadd.f32 %v745, %v809
        %v811 = vpop.f32.mrb[0].mxu0
        %812 = vdwg.mxu0
        %v813 = vsel %vm529, %v799, 0.0
        %v814 = vsel %vm529, %v802, 0.0
        %v815 = vsel %vm529, %v807, 0.0
        %v816 = vsel %vm529, %v810, 0.0
        %v817 = vadd.f32 %v813, %v530
        %v818 = vadd.f32 %v814, %v531
        %v819 = vadd.f32 %v815, %v532
        %v820 = vadd.f32 %v816, %v533
        %s821 = scalar_lea.vmem %s6, 32
        %v822 = vld [vmem:[%s821] sm:$0xff]
        %v823 = vld [vmem:[%s821 + $0x8] sm:$0xff]
        %v824 = vld [vmem:[%s821 + $0x10] sm:$0xff]
        %v825 = vld [vmem:[%s821 + $0x18] sm:$0xff]
        %827 = vset.pattern.permute.xlu0 0
        %828 = vperm.xlu0 %827, %v822
        %v829 = vpop.permute.xlu0 %828
        %832 = vset.pattern.permute.xlu0 0
        %833 = vperm.xlu0 %832, %v823
        %v834 = vpop.permute.xlu0 %833
        %837 = vset.pattern.permute.xlu0 0
        %838 = vperm.xlu0 %837, %v824
        %v839 = vpop.permute.xlu0 %838
        %842 = vset.pattern.permute.xlu0 0
        %843 = vperm.xlu0 %842, %v825
        %v844 = vpop.permute.xlu0 %843
        %v846 = vmul.f32 %v817, %v829
        %v847 = vmul.f32 %v818, %v834
        %v848 = vmul.f32 %v819, %v839
        %v849 = vmul.f32 %v820, %v844
        %s850 = scalar_lea.vmem %s7, 32
        %v851 = vld [vmem:[%s850] sm:$0xff]
        %v852 = vld [vmem:[%s850 + $0x8] sm:$0xff]
        %v853 = vld [vmem:[%s850 + $0x10] sm:$0xff]
        %v854 = vld [vmem:[%s850 + $0x18] sm:$0xff]
        %856 = vset.pattern.permute.xlu0 0
        %857 = vperm.xlu0 %856, %v851
        %v858 = vpop.permute.xlu0 %857
        %861 = vset.pattern.permute.xlu0 0
        %862 = vperm.xlu0 %861, %v852
        %v863 = vpop.permute.xlu0 %862
        %866 = vset.pattern.permute.xlu0 0
        %867 = vperm.xlu0 %866, %v853
        %v868 = vpop.permute.xlu0 %867
        %871 = vset.pattern.permute.xlu0 0
        %872 = vperm.xlu0 %871, %v854
        %v873 = vpop.permute.xlu0 %872
        %v875 = vadd.f32 %v846, %v858
        %v876 = vadd.f32 %v847, %v863
        %v877 = vadd.f32 %v848, %v868
        %v878 = vadd.f32 %v849, %v873
        %v879 = vmax.f32 %v875, 0.0
        %v880 = vmax.f32 %v876, 0.0
        %v881 = vmax.f32 %v877, 0.0
        %v882 = vmax.f32 %v878, 0.0
        %v883 = vsel %vm595, %v879, 0.0
        %v884 = vsel %vm595, %v880, 0.0
        %v885 = vsel %vm595, %v881, 0.0
        %v886 = vsel %vm595, %v882, 0.0
        %s887 = scalar_lea.vmem %s4, 8
        %v888 = vld [vmem:[%s887] sm:$0xf]
        %v889 = vld [vmem:[%s887 + $0x4] sm:$0xf]
        %s890 = scalar_lea.vmem %s5, 16
        %v891 = vld [vmem:[%s890] sm:$0xff]
        %v892 = vld [vmem:[%s890 + $0x8] sm:$0xff]
        %893 = vrot.lane.b32.xlu0 %v883, 1
        %v894 = vpop.permute.xlu0 %893
        %895 = vrot.lane.b32.xlu0 %v884, 1
        %v896 = vpop.permute.xlu0 %895
        %897 = vrot.lane.b32.xlu0 %v885, 1
        %v898 = vpop.permute.xlu0 %897
        %899 = vrot.lane.b32.xlu0 %v886, 1
        %v900 = vpop.permute.xlu0 %899
        %901 = vrot.lane.b32.xlu0 %v883, 127
        %v902 = vpop.permute.xlu0 %901
        %903 = vrot.lane.b32.xlu0 %v884, 127
        %v904 = vpop.permute.xlu0 %903
        %905 = vrot.lane.b32.xlu0 %v885, 127
        %v906 = vpop.permute.xlu0 %905
        %907 = vrot.lane.b32.xlu0 %v886, 127
        %v908 = vpop.permute.xlu0 %907
        %v909 = vpack.c.bf16 %v896, %v894
        %v910 = vpack.c.bf16 %v900, %v898
        %v911 = vpack.c.bf16 %v884, %v883
        %v912 = vpack.c.bf16 %v886, %v885
        %v913 = vpack.c.bf16 %v904, %v902
        %v914 = vpack.c.bf16 %v908, %v906
        %916 = vset.pattern.permute.xlu0 0
        %917 = vperm.xlu0 %916, %v891
        %v918 = vpop.permute.xlu0 %917
        %921 = vset.pattern.permute.xlu0 0
        %922 = vperm.xlu0 %921, %v892
        %v923 = vpop.permute.xlu0 %922
        %v927 = vunpack.c.l.b16 %v888
        %v928 = vunpack.c.l.b16 %v889
        %v929 = vpack.c.b16 %v928, %v927
        %v931 = vsel %vm641, %v929, 0
        %933 = vmatprep.subr.bf16.mxu0 0
        %934 = vmatpush1.bf16.msra.mxu0 %v909
        %935 = vmatprep.subr.bf16.mxu0 0
        %936 = vmatpush1.bf16.msra.mxu0 %v910
        %937 = vmatprep.subr.bf16.mxu0 0
        %938 = vmatpush1.bf16.msra.mxu0 %v911
        %939 = vmatprep.subr.bf16.mxu0 0
        %940 = vmatpush1.bf16.msra.mxu0 %v912
        %941 = vmatprep.subr.bf16.mxu0 0
        %942 = vmatpush1.bf16.msra.mxu0 %v913
        %943 = vmatprep.subr.bf16.mxu0 0
        %944 = vmatpush1.bf16.msra.mxu0 %v914
        %945 = vmatprep.subr.bf16.mxu0 0
        %946 = vmatpush1.bf16.msra.mxu0 0
        %947 = vmatprep.subr.bf16.mxu0 0
        %948 = vmatpush1.bf16.msra.mxu0 0
        %949 = vmatprep.subr.bf16.mxu0 0
        %950 = vmatpush1.bf16.msra.mxu0 0
        %951 = vmatprep.subr.bf16.mxu0 0
        %952 = vmatpush1.bf16.msra.mxu0 0
        %953 = vmatprep.subr.bf16.mxu0 0
        %954 = vmatpush1.bf16.msra.mxu0 0
        %955 = vmatprep.subr.bf16.mxu0 0
        %956 = vmatpush1.bf16.msra.mxu0 0
        %957 = vmatprep.subr.bf16.mxu0 0
        %958 = vmatpush1.bf16.msra.mxu0 0
        %959 = vmatprep.subr.bf16.mxu0 0
        %960 = vmatpush1.bf16.msra.mxu0 0
        %961 = vmatprep.subr.bf16.mxu0 0
        %962 = vmatpush1.bf16.msra.mxu0 0
        %963 = vmatprep.subr.bf16.mxu0 0
        %964 = vmatpush1.bf16.msra.mxu0 0
        %965 = vmatprep.mubr.bf16.mxu0 0
        %966 = vmatmul.mubr.bf16.gmra.mrb[0].mxu0 %v931
        %v967 = vpop.f32.mrb[0].mxu0
        %v968 = vadd.f32 %v918, %v967
        %v969 = vpop.f32.mrb[0].mxu0
        %v970 = vpop.f32.mrb[0].mxu0
        %v971 = vadd.f32 %v923, %v970
        %v972 = vpop.f32.mrb[0].mxu0
        %973 = vdwg.mxu0
        %v974 = vsel %vm529, %v968, 0.0
        %v975 = vsel %vm529, %v971, 0.0
        %s976 = scalar_lea.vmem %s10, 16
        %v977 = vld [vmem:[%s976] sm:$0xff]
        %v978 = vld [vmem:[%s976 + $0x8] sm:$0xff]
        %980 = vset.pattern.permute.xlu0 0
        %981 = vperm.xlu0 %980, %v977
        %v982 = vpop.permute.xlu0 %981
        %985 = vset.pattern.permute.xlu0 0
        %986 = vperm.xlu0 %985, %v978
        %v987 = vpop.permute.xlu0 %986
        %v989 = vmul.f32 %v974, %v982
        %v990 = vmul.f32 %v975, %v987
        %s991 = scalar_lea.vmem %s11, 16
        %v992 = vld [vmem:[%s991] sm:$0xff]
        %v993 = vld [vmem:[%s991 + $0x8] sm:$0xff]
        %995 = vset.pattern.permute.xlu0 0
        %996 = vperm.xlu0 %995, %v992
        %v997 = vpop.permute.xlu0 %996
        %1000 = vset.pattern.permute.xlu0 0
        %1001 = vperm.xlu0 %1000, %v993
        %v1002 = vpop.permute.xlu0 %1001
        %v1004 = vadd.f32 %v989, %v997
        %v1005 = vadd.f32 %v990, %v1002
        %v1006 = vmax.f32 %v1004, 0.0
        %v1007 = vmax.f32 %v1005, 0.0
        %s1008 = scalar_lea.vmem %s8, 16
        %v1009 = vld [vmem:[%s1008] sm:$0xf]
        %v1010 = vld [vmem:[%s1008 + $0x4] sm:$0xf]
        %v1011 = vld [vmem:[%s1008 + $0x8] sm:$0xf]
        %v1012 = vld [vmem:[%s1008 + $0xc] sm:$0xf]
        %s1013 = scalar_lea.vmem %s9, 32
        %v1014 = vld [vmem:[%s1013] sm:$0xff]
        %v1015 = vld [vmem:[%s1013 + $0x8] sm:$0xff]
        %v1016 = vld [vmem:[%s1013 + $0x10] sm:$0xff]
        %v1017 = vld [vmem:[%s1013 + $0x18] sm:$0xff]
        %v1018 = vpack.c.bf16 %v1007, %v1006
        %1020 = vset.pattern.permute.xlu0 0
        %1021 = vperm.xlu0 %1020, %v1014
        %v1022 = vpop.permute.xlu0 %1021
        %1025 = vset.pattern.permute.xlu0 0
        %1026 = vperm.xlu0 %1025, %v1015
        %v1027 = vpop.permute.xlu0 %1026
        %1030 = vset.pattern.permute.xlu0 0
        %1031 = vperm.xlu0 %1030, %v1016
        %v1032 = vpop.permute.xlu0 %1031
        %1035 = vset.pattern.permute.xlu0 0
        %1036 = vperm.xlu0 %1035, %v1017
        %v1037 = vpop.permute.xlu0 %1036
        %v1043 = vunpack.c.l.b16 %v1009
        %v1044 = vunpack.c.l.b16 %v1010
        %v1045 = vunpack.c.l.b16 %v1011
        %v1046 = vunpack.c.l.b16 %v1012
        %v1047 = vpack.c.b16 %v1044, %v1043
        %v1048 = vpack.c.b16 %v1046, %v1045
        %v1050 = vsel %vm757, %v1047, 0
        %v1053 = vsel %vm757, %v1048, 0
        %1055 = vmatprep.subr.bf16.mxu0 0
        %1056 = vmatpush1.bf16.msra.mxu0 %v1018
        %1057 = vmatprep.subr.bf16.mxu0 0
        %1058 = vmatpush1.bf16.msra.mxu0 0
        %1059 = vmatprep.subr.bf16.mxu0 0
        %1060 = vmatpush1.bf16.msra.mxu0 0
        %1061 = vmatprep.subr.bf16.mxu0 0
        %1062 = vmatpush1.bf16.msra.mxu0 0
        %1063 = vmatprep.subr.bf16.mxu0 0
        %1064 = vmatpush1.bf16.msra.mxu0 0
        %1065 = vmatprep.subr.bf16.mxu0 0
        %1066 = vmatpush1.bf16.msra.mxu0 0
        %1067 = vmatprep.subr.bf16.mxu0 0
        %1068 = vmatpush1.bf16.msra.mxu0 0
        %1069 = vmatprep.subr.bf16.mxu0 0
        %1070 = vmatpush1.bf16.msra.mxu0 0
        %1071 = vmatprep.subr.bf16.mxu0 0
        %1072 = vmatpush1.bf16.msra.mxu0 0
        %1073 = vmatprep.subr.bf16.mxu0 0
        %1074 = vmatpush1.bf16.msra.mxu0 0
        %1075 = vmatprep.subr.bf16.mxu0 0
        %1076 = vmatpush1.bf16.msra.mxu0 0
        %1077 = vmatprep.subr.bf16.mxu0 0
        %1078 = vmatpush1.bf16.msra.mxu0 0
        %1079 = vmatprep.subr.bf16.mxu0 0
        %1080 = vmatpush1.bf16.msra.mxu0 0
        %1081 = vmatprep.subr.bf16.mxu0 0
        %1082 = vmatpush1.bf16.msra.mxu0 0
        %1083 = vmatprep.subr.bf16.mxu0 0
        %1084 = vmatpush1.bf16.msra.mxu0 0
        %1085 = vmatprep.subr.bf16.mxu0 0
        %1086 = vmatpush1.bf16.msra.mxu0 0
        %1087 = vmatprep.mubr.bf16.mxu0 0
        %1088 = vmatmul.mubr.bf16.gmra.mrb[0].mxu0 %v1050
        %v1089 = vpop.f32.mrb[0].mxu0
        %v1090 = vadd.f32 %v1022, %v1089
        %v1091 = vpop.f32.mrb[0].mxu0
        %v1092 = vpop.f32.mrb[0].mxu0
        %v1093 = vadd.f32 %v1027, %v1092
        %v1094 = vpop.f32.mrb[0].mxu0
        %1095 = vmatprep.mubr.bf16.mxu0 0
        %1096 = vmatmul.mubr.bf16.gmra.mrb[0].mxu0 %v1053
        %v1097 = vpop.f32.mrb[0].mxu0
        %v1098 = vadd.f32 %v1032, %v1097
        %v1099 = vpop.f32.mrb[0].mxu0
        %v1100 = vpop.f32.mrb[0].mxu0
        %v1101 = vadd.f32 %v1037, %v1100
        %v1102 = vpop.f32.mrb[0].mxu0
        %1103 = vdwg.mxu0
        %v1104 = vsel %vm529, %v1090, 0.0
        %v1105 = vsel %vm529, %v1093, 0.0
        %v1106 = vsel %vm529, %v1098, 0.0
        %v1107 = vsel %vm529, %v1101, 0.0
        %v1108 = vadd.f32 %v1104, %v817
        %v1109 = vadd.f32 %v1105, %v818
        %v1110 = vadd.f32 %v1106, %v819
        %v1111 = vadd.f32 %v1107, %v820
        %s1112 = scalar_lea.vmem %s6, 64
        %v1113 = vld [vmem:[%s1112] sm:$0xff]
        %v1114 = vld [vmem:[%s1112 + $0x8] sm:$0xff]
        %v1115 = vld [vmem:[%s1112 + $0x10] sm:$0xff]
        %v1116 = vld [vmem:[%s1112 + $0x18] sm:$0xff]
        %1118 = vset.pattern.permute.xlu0 0
        %1119 = vperm.xlu0 %1118, %v1113
        %v1120 = vpop.permute.xlu0 %1119
        %1123 = vset.pattern.permute.xlu0 0
        %1124 = vperm.xlu0 %1123, %v1114
        %v1125 = vpop.permute.xlu0 %1124
        %1128 = vset.pattern.permute.xlu0 0
        %1129 = vperm.xlu0 %1128, %v1115
        %v1130 = vpop.permute.xlu0 %1129
        %1133 = vset.pattern.permute.xlu0 0
        %1134 = vperm.xlu0 %1133, %v1116
        %v1135 = vpop.permute.xlu0 %1134
        %v1137 = vmul.f32 %v1108, %v1120
        %v1138 = vmul.f32 %v1109, %v1125
        %v1139 = vmul.f32 %v1110, %v1130
        %v1140 = vmul.f32 %v1111, %v1135
        %s1141 = scalar_lea.vmem %s7, 64
        %v1142 = vld [vmem:[%s1141] sm:$0xff]
        %v1143 = vld [vmem:[%s1141 + $0x8] sm:$0xff]
        %v1144 = vld [vmem:[%s1141 + $0x10] sm:$0xff]
        %v1145 = vld [vmem:[%s1141 + $0x18] sm:$0xff]
        %1147 = vset.pattern.permute.xlu0 0
        %1148 = vperm.xlu0 %1147, %v1142
        %v1149 = vpop.permute.xlu0 %1148
        %1152 = vset.pattern.permute.xlu0 0
        %1153 = vperm.xlu0 %1152, %v1143
        %v1154 = vpop.permute.xlu0 %1153
        %1157 = vset.pattern.permute.xlu0 0
        %1158 = vperm.xlu0 %1157, %v1144
        %v1159 = vpop.permute.xlu0 %1158
        %1162 = vset.pattern.permute.xlu0 0
        %1163 = vperm.xlu0 %1162, %v1145
        %v1164 = vpop.permute.xlu0 %1163
        %v1166 = vadd.f32 %v1137, %v1149
        %v1167 = vadd.f32 %v1138, %v1154
        %v1168 = vadd.f32 %v1139, %v1159
        %v1169 = vadd.f32 %v1140, %v1164
        %v1170 = vmax.f32 %v1166, 0.0
        %v1171 = vmax.f32 %v1167, 0.0
        %v1172 = vmax.f32 %v1168, 0.0
        %v1173 = vmax.f32 %v1169, 0.0
        %v1174 = vsel %vm595, %v1170, 0.0
        %v1175 = vsel %vm595, %v1171, 0.0
        %v1176 = vsel %vm595, %v1172, 0.0
        %v1177 = vsel %vm595, %v1173, 0.0
        %s1178 = scalar_lea.vmem %s4, 16
        %v1179 = vld [vmem:[%s1178] sm:$0xf]
        %v1180 = vld [vmem:[%s1178 + $0x4] sm:$0xf]
        %s1181 = scalar_lea.vmem %s5, 32
        %v1182 = vld [vmem:[%s1181] sm:$0xff]
        %v1183 = vld [vmem:[%s1181 + $0x8] sm:$0xff]
        %1184 = vrot.lane.b32.xlu0 %v1174, 2
        %v1185 = vpop.permute.xlu0 %1184
        %1186 = vrot.lane.b32.xlu0 %v1175, 2
        %v1187 = vpop.permute.xlu0 %1186
        %1188 = vrot.lane.b32.xlu0 %v1176, 2
        %v1189 = vpop.permute.xlu0 %1188
        %1190 = vrot.lane.b32.xlu0 %v1177, 2
        %v1191 = vpop.permute.xlu0 %1190
        %1192 = vrot.lane.b32.xlu0 %v1174, 126
        %v1193 = vpop.permute.xlu0 %1192
        %1194 = vrot.lane.b32.xlu0 %v1175, 126
        %v1195 = vpop.permute.xlu0 %1194
        %1196 = vrot.lane.b32.xlu0 %v1176, 126
        %v1197 = vpop.permute.xlu0 %1196
        %1198 = vrot.lane.b32.xlu0 %v1177, 126
        %v1199 = vpop.permute.xlu0 %1198
        %v1200 = vpack.c.bf16 %v1187, %v1185
        %v1201 = vpack.c.bf16 %v1191, %v1189
        %v1202 = vpack.c.bf16 %v1175, %v1174
        %v1203 = vpack.c.bf16 %v1177, %v1176
        %v1204 = vpack.c.bf16 %v1195, %v1193
        %v1205 = vpack.c.bf16 %v1199, %v1197
        %1207 = vset.pattern.permute.xlu0 0
        %1208 = vperm.xlu0 %1207, %v1182
        %v1209 = vpop.permute.xlu0 %1208
        %1212 = vset.pattern.permute.xlu0 0
        %1213 = vperm.xlu0 %1212, %v1183
        %v1214 = vpop.permute.xlu0 %1213
        %v1218 = vunpack.c.l.b16 %v1179
        %v1219 = vunpack.c.l.b16 %v1180
        %v1220 = vpack.c.b16 %v1219, %v1218
        %v1222 = vsel %vm641, %v1220, 0
        %1224 = vmatprep.subr.bf16.mxu0 0
        %1225 = vmatpush1.bf16.msra.mxu0 %v1200
        %1226 = vmatprep.subr.bf16.mxu0 0
        %1227 = vmatpush1.bf16.msra.mxu0 %v1201
        %1228 = vmatprep.subr.bf16.mxu0 0
        %1229 = vmatpush1.bf16.msra.mxu0 %v1202
        %1230 = vmatprep.subr.bf16.mxu0 0
        %1231 = vmatpush1.bf16.msra.mxu0 %v1203
        %1232 = vmatprep.subr.bf16.mxu0 0
        %1233 = vmatpush1.bf16.msra.mxu0 %v1204
        %1234 = vmatprep.subr.bf16.mxu0 0
        %1235 = vmatpush1.bf16.msra.mxu0 %v1205
        %1236 = vmatprep.subr.bf16.mxu0 0
        %1237 = vmatpush1.bf16.msra.mxu0 0
        %1238 = vmatprep.subr.bf16.mxu0 0
        %1239 = vmatpush1.bf16.msra.mxu0 0
        %1240 = vmatprep.subr.bf16.mxu0 0
        %1241 = vmatpush1.bf16.msra.mxu0 0
        %1242 = vmatprep.subr.bf16.mxu0 0
        %1243 = vmatpush1.bf16.msra.mxu0 0
        %1244 = vmatprep.subr.bf16.mxu0 0
        %1245 = vmatpush1.bf16.msra.mxu0 0
        %1246 = vmatprep.subr.bf16.mxu0 0
        %1247 = vmatpush1.bf16.msra.mxu0 0
        %1248 = vmatprep.subr.bf16.mxu0 0
        %1249 = vmatpush1.bf16.msra.mxu0 0
        %1250 = vmatprep.subr.bf16.mxu0 0
        %1251 = vmatpush1.bf16.msra.mxu0 0
        %1252 = vmatprep.subr.bf16.mxu0 0
        %1253 = vmatpush1.bf16.msra.mxu0 0
        %1254 = vmatprep.subr.bf16.mxu0 0
        %1255 = vmatpush1.bf16.msra.mxu0 0
        %1256 = vmatprep.mubr.bf16.mxu0 0
        %1257 = vmatmul.mubr.bf16.gmra.mrb[0].mxu0 %v1222
        %v1258 = vpop.f32.mrb[0].mxu0
        %v1259 = vadd.f32 %v1209, %v1258
        %v1260 = vpop.f32.mrb[0].mxu0
        %v1261 = vpop.f32.mrb[0].mxu0
        %v1262 = vadd.f32 %v1214, %v1261
        %v1263 = vpop.f32.mrb[0].mxu0
        %1264 = vdwg.mxu0
        %v1265 = vsel %vm529, %v1259, 0.0
        %v1266 = vsel %vm529, %v1262, 0.0
        %s1267 = scalar_lea.vmem %s10, 32
        %v1268 = vld [vmem:[%s1267] sm:$0xff]
        %v1269 = vld [vmem:[%s1267 + $0x8] sm:$0xff]
        %1271 = vset.pattern.permute.xlu0 0
        %1272 = vperm.xlu0 %1271, %v1268
        %v1273 = vpop.permute.xlu0 %1272
        %1276 = vset.pattern.permute.xlu0 0
        %1277 = vperm.xlu0 %1276, %v1269
        %v1278 = vpop.permute.xlu0 %1277
        %v1280 = vmul.f32 %v1265, %v1273
        %v1281 = vmul.f32 %v1266, %v1278
        %s1282 = scalar_lea.vmem %s11, 32
        %v1283 = vld [vmem:[%s1282] sm:$0xff]
        %v1284 = vld [vmem:[%s1282 + $0x8] sm:$0xff]
        %1286 = vset.pattern.permute.xlu0 0
        %1287 = vperm.xlu0 %1286, %v1283
        %v1288 = vpop.permute.xlu0 %1287
        %1291 = vset.pattern.permute.xlu0 0
        %1292 = vperm.xlu0 %1291, %v1284
        %v1293 = vpop.permute.xlu0 %1292
        %v1295 = vadd.f32 %v1280, %v1288
        %v1296 = vadd.f32 %v1281, %v1293
        %v1297 = vmax.f32 %v1295, 0.0
        %v1298 = vmax.f32 %v1296, 0.0
        %s1299 = scalar_lea.vmem %s8, 32
        %v1300 = vld [vmem:[%s1299] sm:$0xf]
        %v1301 = vld [vmem:[%s1299 + $0x4] sm:$0xf]
        %v1302 = vld [vmem:[%s1299 + $0x8] sm:$0xf]
        %v1303 = vld [vmem:[%s1299 + $0xc] sm:$0xf]
        %s1304 = scalar_lea.vmem %s9, 64
        %v1305 = vld [vmem:[%s1304] sm:$0xff]
        %v1306 = vld [vmem:[%s1304 + $0x8] sm:$0xff]
        %v1307 = vld [vmem:[%s1304 + $0x10] sm:$0xff]
        %v1308 = vld [vmem:[%s1304 + $0x18] sm:$0xff]
        %v1309 = vpack.c.bf16 %v1298, %v1297
        %1311 = vset.pattern.permute.xlu0 0
        %1312 = vperm.xlu0 %1311, %v1305
        %v1313 = vpop.permute.xlu0 %1312
        %1316 = vset.pattern.permute.xlu0 0
        %1317 = vperm.xlu0 %1316, %v1306
        %v1318 = vpop.permute.xlu0 %1317
        %1321 = vset.pattern.permute.xlu0 0
        %1322 = vperm.xlu0 %1321, %v1307
        %v1323 = vpop.permute.xlu0 %1322
        %1326 = vset.pattern.permute.xlu0 0
        %1327 = vperm.xlu0 %1326, %v1308
        %v1328 = vpop.permute.xlu0 %1327
        %v1334 = vunpack.c.l.b16 %v1300
        %v1335 = vunpack.c.l.b16 %v1301
        %v1336 = vunpack.c.l.b16 %v1302
        %v1337 = vunpack.c.l.b16 %v1303
        %v1338 = vpack.c.b16 %v1335, %v1334
        %v1339 = vpack.c.b16 %v1337, %v1336
        %v1341 = vsel %vm757, %v1338, 0
        %v1344 = vsel %vm757, %v1339, 0
        %1346 = vmatprep.subr.bf16.mxu0 0
        %1347 = vmatpush1.bf16.msra.mxu0 %v1309
        %1348 = vmatprep.subr.bf16.mxu0 0
        %1349 = vmatpush1.bf16.msra.mxu0 0
        %1350 = vmatprep.subr.bf16.mxu0 0
        %1351 = vmatpush1.bf16.msra.mxu0 0
        %1352 = vmatprep.subr.bf16.mxu0 0
        %1353 = vmatpush1.bf16.msra.mxu0 0
        %1354 = vmatprep.subr.bf16.mxu0 0
        %1355 = vmatpush1.bf16.msra.mxu0 0
        %1356 = vmatprep.subr.bf16.mxu0 0
        %1357 = vmatpush1.bf16.msra.mxu0 0
        %1358 = vmatprep.subr.bf16.mxu0 0
        %1359 = vmatpush1.bf16.msra.mxu0 0
        %1360 = vmatprep.subr.bf16.mxu0 0
        %1361 = vmatpush1.bf16.msra.mxu0 0
        %1362 = vmatprep.subr.bf16.mxu0 0
        %1363 = vmatpush1.bf16.msra.mxu0 0
        %1364 = vmatprep.subr.bf16.mxu0 0
        %1365 = vmatpush1.bf16.msra.mxu0 0
        %1366 = vmatprep.subr.bf16.mxu0 0
        %1367 = vmatpush1.bf16.msra.mxu0 0
        %1368 = vmatprep.subr.bf16.mxu0 0
        %1369 = vmatpush1.bf16.msra.mxu0 0
        %1370 = vmatprep.subr.bf16.mxu0 0
        %1371 = vmatpush1.bf16.msra.mxu0 0
        %1372 = vmatprep.subr.bf16.mxu0 0
        %1373 = vmatpush1.bf16.msra.mxu0 0
        %1374 = vmatprep.subr.bf16.mxu0 0
        %1375 = vmatpush1.bf16.msra.mxu0 0
        %1376 = vmatprep.subr.bf16.mxu0 0
        %1377 = vmatpush1.bf16.msra.mxu0 0
        %1378 = vmatprep.mubr.bf16.mxu0 0
        %1379 = vmatmul.mubr.bf16.gmra.mrb[0].mxu0 %v1341
        %v1380 = vpop.f32.mrb[0].mxu0
        %v1381 = vadd.f32 %v1313, %v1380
        %v1382 = vpop.f32.mrb[0].mxu0
        %v1383 = vpop.f32.mrb[0].mxu0
        %v1384 = vadd.f32 %v1318, %v1383
        %v1385 = vpop.f32.mrb[0].mxu0
        %1386 = vmatprep.mubr.bf16.mxu0 0
        %1387 = vmatmul.mubr.bf16.gmra.mrb[0].mxu0 %v1344
        %v1388 = vpop.f32.mrb[0].mxu0
        %v1389 = vadd.f32 %v1323, %v1388
        %v1390 = vpop.f32.mrb[0].mxu0
        %v1391 = vpop.f32.mrb[0].mxu0
        %v1392 = vadd.f32 %v1328, %v1391
        %v1393 = vpop.f32.mrb[0].mxu0
        %1394 = vdwg.mxu0
        %v1395 = vsel %vm529, %v1381, 0.0
        %v1396 = vsel %vm529, %v1384, 0.0
        %v1397 = vsel %vm529, %v1389, 0.0
        %v1398 = vsel %vm529, %v1392, 0.0
        %v1399 = vadd.f32 %v1395, %v1108
        %v1400 = vadd.f32 %v1396, %v1109
        %v1401 = vadd.f32 %v1397, %v1110
        %v1402 = vadd.f32 %v1398, %v1111
        %1403 = vst [vmem:[%s359] sm:$0xff] %v1399
        %1404 = vst [vmem:[%s359 + $0x8] sm:$0xff] %v1400
        %1405 = vst [vmem:[%s359 + $0x10] sm:$0xff] %v1401
        %1406 = vst [vmem:[%s359 + $0x18] sm:$0xff] %v1402
        %s1407 = sand.u32 %s264, 1
        %s1408 = scalar_lea.sflag [#allocation7], %s1407
        %s1409 = sand.u32 %s264, 1
        %s1410 = smul.addr %s1409, 32
        %s1411 = scalar_lea.vmem [#allocation6], %s1410
        // Predicated region
        $region95: #{tpu_custom_call.1} parent=59 // pred_check
          %p1412 = pneg %p274
        $region96: #{tpu_custom_call.1} parent=59 // pred_check_branch
          %1414 = sbr.rel (%p1412) target = $region98
        $region97: #{tpu_custom_call.1} parent=59 // pred_region
          %s1416 = ssub.s32 512, 512
          %1417 = vsyncadd %s1408, %s1416
          %s1418 = smul.addr %s36, 4
          %s1419 = sadd.s32 %s37, %s1418
          %s1420 = smul.addr %s1419, 128
          %s1421 = scalar_lea.hbm %s12, %s1420
          %s1422 = sshll.u32 %s1411, 4
          %s1423 = int_to_ptr.vmem [resolvable:$true] %s1422
          %1428 = dma.vmem_to_hbm [thread:$0]  %s1423, 512, %s1421, %s1408, 128, 128, 8
        $region98: #{tpu_custom_call.1} parent=59 // pred_fallthru
          _
      $region60: #{tpu_custom_call.1} parent=5 // pred_fallthru
        _
      %p1429 = scmp.le.s32.totalorder 2, %s27
      // Predicated region
      $region99: #{tpu_custom_call.1} parent=5 // pred_check
        %p1430 = pneg %p1429
      $region100: #{tpu_custom_call.1} parent=5 // pred_check_branch
        %1432 = sbr.rel (%p1430) target = $region102
      $region101: #{tpu_custom_call.1} parent=5 // pred_region
        %s1433 = ssub.s32 %s27, 2
        // Predicated region
        $region103: #{tpu_custom_call.1} parent=101 // pred_check
          %p1434 = pneg %p280
        $region104: #{tpu_custom_call.1} parent=101 // pred_check_branch
          %1436 = sbr.rel (%p1434) target = $region106
        $region105: #{tpu_custom_call.1} parent=101 // pred_region
          %s1437 = sand.u32 %s265, 1
          %s1438 = scalar_lea.sflag [#allocation7], %s1437
          %s1439 = sand.u32 %s265, 1
          %s1440 = smul.addr %s1439, 32
          %s1441 = scalar_lea.vmem [#allocation6], %s1440
          %1442 = dma.done %s1438, 512
        $region106: #{tpu_custom_call.1} parent=101 // pred_fallthru
          _
      $region102: #{tpu_custom_call.1} parent=5 // pred_fallthru
        _
    $region6: #{tpu_custom_call.1} parent=1 // loop_footer
      %s31 = sadd.s32 1, %s27
    $region7: #{tpu_custom_call.1} parent=1 // loop_footer_branch
      %26 = sbr.rel target = $region3
    $region8: #{tpu_custom_call.1} parent=1 // loop_exit
      _
    %1443 = vsyncpa [#allocation7], 1
    %s1444 = scalar_lea.sflag [#allocation7], 1
    %1445 = vsyncpa %s1444, 1
  %1446 = vsyncmov [#allocation3]
  %s1447 = vpop.sfrf %1446
  %p1448 = scmp.eq.s32.totalorder %s1447, 0
  %p1449 = pneg %p1448
  %1451 = shalt.err (%p1449)

</llo_original>
